<compile_context>
chip_gen: v5e
topology: v5e:2x2
jax: 0.10.0
libtpu: 0.0.40
codegen_flags: <defaults>
</compile_context>

<pallas_src>
import jax
import jax.numpy as jnp
from jax import lax
from jax.experimental import pallas as pl
from jax.experimental.pallas import tpu as pltpu


def _round_up(x, m):
    return (x + m - 1) // m * m


def _pad_gate_weight_t(w, h, h_pad, k, k_pad):
    """PyTorch gate-stacked weight (4H, K) -> zero-padded transposed (K_pad, 4*H_pad).

    Padding is done per gate block so the i/f/g/o order is preserved at
    128-lane-aligned offsets."""
    w4 = w.reshape(4, h, k)
    w4 = jnp.pad(w4, ((0, 0), (0, h_pad - h), (0, k_pad - k)))
    return jnp.transpose(w4, (2, 0, 1)).reshape(k_pad, 4 * h_pad)


def lstm_classifier_forward(tokens, seq_len, params):
    """tokens: (B, T) int32; seq_len: (B,) int32 (sorted descending, as
    pack_padded_sequence with enforce_sorted=True requires)."""
    B, T = tokens.shape
    V, E = params['embedding'].shape
    H = params['w_hh'].shape[1]
    L = params['w_fc'].shape[0]

    E_pad = _round_up(E, 128)
    H_pad = _round_up(H, 128)
    B_pad = _round_up(B, 8)

    # ---- wrapper-side glue: gather + zero-padding (no big transpose pass) ----
    emb_table = jnp.pad(params['embedding'].astype(jnp.float32),
                        ((0, 0), (0, E_pad - E)))                       # (V, E_pad)
    tokens_p = jnp.pad(tokens, ((0, B_pad - B), (0, 0)))                # (B_pad, T)
    seq_p = jnp.pad(seq_len.astype(jnp.int32), (0, B_pad - B))          # (B_pad,)

    # Time-major embedding gather: (T, B_pad, E_pad).
    emb_tbe = jnp.take(emb_table, tokens_p.T, axis=0)
    # nn.Dropout(0.2): identity in eval mode.
    # TODO(synk): training-mode dropout would need pltpu.prng_* inside the kernel.

    # Fused, gate-block-padded LSTM weights: [W_ih^T ; W_hh^T].
    wih_t = _pad_gate_weight_t(params['w_ih'].astype(jnp.float32), H, H_pad, E, E_pad)
    whh_t = _pad_gate_weight_t(params['w_hh'].astype(jnp.float32), H, H_pad, H, H_pad)
    w_cat = jnp.concatenate([wih_t, whh_t], axis=0)                     # (E_pad+H_pad, 4H_pad)

    b4 = (params['b_ih'] + params['b_hh']).astype(jnp.float32).reshape(4, H)
    b_cat = jnp.pad(b4, ((0, 0), (0, H_pad - H))).reshape(1, 4 * H_pad)

    wfc_t = jnp.pad(params['w_fc'].astype(jnp.float32).T,
                    ((0, H_pad - H), (0, 0)))                           # (H_pad, L)
    bfc = params['b_fc'].astype(jnp.float32).reshape(1, L)

    len_i = seq_p.reshape(B_pad, 1)                                     # (B_pad, 1) int32
    inv_len = (1.0 / jnp.maximum(seq_p, 1).astype(jnp.float32)).reshape(B_pad, 1)

    def kernel(emb_ref, len_ref, invlen_ref, wcat_ref, b_ref, wfc_ref, bfc_ref,
               out_ref, xh_ref):
        w_all = wcat_ref[...]        # (E_pad+H_pad, 4*H_pad)
        b_all = b_ref[...]           # (1, 4*H_pad)

        def step(t, carry):
            h_prev, c_prev, s_prev = carry
            # Stage [x_t | h_prev] in persistent VMEM scratch (lane-aligned halves).
            xh_ref[:, :E_pad] = emb_ref[t]
            xh_ref[:, E_pad:] = h_prev
            gates = jnp.dot(xh_ref[...], w_all,
                            preferred_element_type=jnp.float32) + b_all  # (B, 4*H_pad)
            # PyTorch gate order i, f, g, o; each slice is a whole 128-lane vreg.
            i_g = jax.nn.sigmoid(gates[:, 0:H_pad])
            f_g = jax.nn.sigmoid(gates[:, H_pad:2 * H_pad])
            g_g = jnp.tanh(gates[:, 2 * H_pad:3 * H_pad])
            o_g = jax.nn.sigmoid(gates[:, 3 * H_pad:])
            c_new = f_g * c_prev + i_g * g_g
            h_new = o_g * jnp.tanh(c_new)
            # pack_padded semantics: freeze state / exclude from sum past seq_len.
            valid = t < len_ref[...]                                     # (B, 1) bool
            h = jnp.where(valid, h_new, h_prev)
            c = jnp.where(valid, c_new, c_prev)
            s = s_prev + jnp.where(valid, h_new, 0.0)
            return h, c, s

        zeros = jnp.zeros((B_pad, H_pad), jnp.float32)
        _, _, s = lax.fori_loop(0, T, step, (zeros, zeros, zeros), unroll=True)

        avg = s * invlen_ref[...]                                        # masked_sum / seq_len
        out_ref[...] = (jnp.dot(avg, wfc_ref[...],
                                preferred_element_type=jnp.float32)
                        + bfc_ref[...]).astype(out_ref.dtype)

    grid_spec = pltpu.PrefetchScalarGridSpec(
        num_scalar_prefetch=0,
        grid=(1,),                       # single invocation; recurrence lives in-kernel
        in_specs=[
            pl.BlockSpec((T, B_pad, E_pad), lambda i: (0, 0, 0)),
            pl.BlockSpec((B_pad, 1), lambda i: (0, 0)),
            pl.BlockSpec((B_pad, 1), lambda i: (0, 0)),
            pl.BlockSpec((E_pad + H_pad, 4 * H_pad), lambda i: (0, 0)),
            pl.BlockSpec((1, 4 * H_pad), lambda i: (0, 0)),
            pl.BlockSpec((H_pad, L), lambda i: (0, 0)),
            pl.BlockSpec((1, L), lambda i: (0, 0)),
        ],
        out_specs=pl.BlockSpec((B_pad, L), lambda i: (0, 0)),
        scratch_shapes=[
            pltpu.VMEM((B_pad, E_pad + H_pad), jnp.float32),   # [x_t | h_prev] staging
        ],
    )

    out = pl.pallas_call(
        kernel,
        out_shape=jax.ShapeDtypeStruct((B_pad, L), jnp.float32),
        grid_spec=grid_spec,
        compiler_params=pltpu.CompilerParams(
            dimension_semantics=("arbitrary",)),
    )(emb_tbe, len_i, inv_len, w_cat, b_cat, wfc_t, bfc)
    return out[:B]


def _reference_forward(tokens, seq_len, params):
    """Pure-JAX reference with the original (unpadded) weights."""
    emb = jnp.take(params['embedding'], tokens, axis=0).astype(jnp.float32)  # (B,T,E)
    B, T = tokens.shape
    H = params['w_hh'].shape[1]
    h = jnp.zeros((B, H), jnp.float32)
    c = jnp.zeros((B, H), jnp.float32)
    s = jnp.zeros((B, H), jnp.float32)
    for t in range(T):
        x_t = emb[:, t, :]
        gates = (x_t @ params['w_ih'].T + h @ params['w_hh'].T
                 + params['b_ih'] + params['b_hh'])
        i_g = jax.nn.sigmoid(gates[:, :H])
        f_g = jax.nn.sigmoid(gates[:, H:2 * H])
        g_g = jnp.tanh(gates[:, 2 * H:3 * H])
        o_g = jax.nn.sigmoid(gates[:, 3 * H:])
        c_new = f_g * c + i_g * g_g
        h_new = o_g * jnp.tanh(c_new)
        m = (t < seq_len).astype(jnp.float32)[:, None]
        h = m * h_new + (1 - m) * h
        c = m * c_new + (1 - m) * c
        s = s + m * h_new
    avg = s / seq_len.astype(jnp.float32)[:, None]
    return avg @ params['w_fc'].T + params['b_fc']


if __name__ == "__main__":
    # Deterministic synthetic parameters (shapes implied by module __init__).
    V, E, H, L = 50, 16, 32, 4          # vocab_size, embed_dim, hidden_size, label_size
    B, T = 2, 8                          # batch, max sequence length

    key = jax.random.PRNGKey(0)
    keys = jax.random.split(key, 8)
    params = {
        'embedding': 0.1 * jax.random.normal(keys[0], (V, E), jnp.float32),
        'w_ih': 0.1 * jax.random.normal(keys[1], (4 * H, E), jnp.float32),
        'w_hh': 0.1 * jax.random.normal(keys[2], (4 * H, H), jnp.float32),
        'b_ih': 0.1 * jax.random.normal(keys[3], (4 * H,), jnp.float32),
        'b_hh': 0.1 * jax.random.normal(keys[4], (4 * H,), jnp.float32),
        'w_fc': 0.1 * jax.random.normal(keys[5], (L, H), jnp.float32),
        'b_fc': 0.1 * jax.random.normal(keys[6], (L,), jnp.float32),
    }

    tokens = jax.random.randint(keys[7], (B, T), 0, V, dtype=jnp.int32)
    seq_len = jnp.array([8, 5], dtype=jnp.int32)   # sorted descending

    logits = lstm_classifier_forward(tokens, seq_len, params)
    jax.block_until_ready(logits)
    assert logits.shape == (B, L)

    ref = _reference_forward(tokens, seq_len, params)
    assert jnp.allclose(logits, ref, atol=2e-3, rtol=2e-2), (logits, ref)
    print("KERNEL_OK")
</pallas_src>

<mosaic_0001>
module attributes {stable_mosaic.version = 11 : i64} {
  func.func @kernel(%arg0: i32, %arg1: memref<8x8x128xf32, #tpu.memory_space<vmem>>, %arg2: memref<8x1xi32, #tpu.memory_space<vmem>>, %arg3: memref<8x1xf32, #tpu.memory_space<vmem>>, %arg4: memref<256x512xf32, #tpu.memory_space<vmem>>, %arg5: memref<1x512xf32, #tpu.memory_space<vmem>>, %arg6: memref<128x4xf32, #tpu.memory_space<vmem>>, %arg7: memref<1x4xf32, #tpu.memory_space<vmem>>, %arg8: memref<8x4xf32, #tpu.memory_space<vmem>>, %arg9: memref<8x256xf32, #tpu.memory_space<vmem>>) attributes {dimension_semantics = [#tpu.dimension_semantics<arbitrary>], iteration_bounds = array<i64: 1>, scalar_prefetch = 0 : i64, scratch_operands = 1 : i64, tpu.core_type = #tpu.core_type<tc>, window_params = [{pipeline_mode = #tpu.pipeline_mode<synchronous>, transform_indices = @transform_0, window_bounds = array<i64: 8, 8, 128>}, {pipeline_mode = #tpu.pipeline_mode<synchronous>, transform_indices = @transform_1, window_bounds = array<i64: 8, 1>}, {pipeline_mode = #tpu.pipeline_mode<synchronous>, transform_indices = @transform_2, window_bounds = array<i64: 8, 1>}, {pipeline_mode = #tpu.pipeline_mode<synchronous>, transform_indices = @transform_3, window_bounds = array<i64: 256, 512>}, {pipeline_mode = #tpu.pipeline_mode<synchronous>, transform_indices = @transform_4, window_bounds = array<i64: 1, 512>}, {pipeline_mode = #tpu.pipeline_mode<synchronous>, transform_indices = @transform_5, window_bounds = array<i64: 128, 4>}, {pipeline_mode = #tpu.pipeline_mode<synchronous>, transform_indices = @transform_6, window_bounds = array<i64: 1, 4>}, {pipeline_mode = #tpu.pipeline_mode<synchronous>, transform_indices = @transform_7, window_bounds = array<i64: 8, 4>}]} {
    %c0 = arith.constant 0 : index
    %c0_0 = arith.constant 0 : index
    %0 = vector.load %arg4[%c0, %c0_0] : memref<256x512xf32, #tpu.memory_space<vmem>>, vector<256x512xf32>
    %c0_1 = arith.constant 0 : index
    %c0_2 = arith.constant 0 : index
    %1 = vector.load %arg5[%c0_1, %c0_2] : memref<1x512xf32, #tpu.memory_space<vmem>>, vector<1x512xf32>
    %cst = arith.constant 0.000000e+00 : f32
    %2 = vector.broadcast %cst : f32 to vector<8x128xf32>
    %c0_i32 = arith.constant 0 : i32
    %3 = arith.index_cast %c0_i32 : i32 to index
    %c0_3 = arith.constant 0 : index
    %c0_4 = arith.constant 0 : index
    %4 = vector.load %arg1[%3, %c0_3, %c0_4] : memref<8x8x128xf32, #tpu.memory_space<vmem>>, vector<1x8x128xf32>
    %5 = vector.shape_cast %4 : vector<1x8x128xf32> to vector<8x128xf32>
    %c0_5 = arith.constant 0 : index
    %c0_6 = arith.constant 0 : index
    %6 = vector.load %arg9[%c0_5, %c0_6] : memref<8x256xf32, #tpu.memory_space<vmem>>, vector<8x128xf32>
    tpu.vector_store %arg9[%c0_5, %c0_6], %5 {strides = array<i32>} : memref<8x256xf32, #tpu.memory_space<vmem>>, vector<8x128xf32>,
    %c0_7 = arith.constant 0 : index
    %c128 = arith.constant 128 : index
    %7 = vector.load %arg9[%c0_7, %c128] : memref<8x256xf32, #tpu.memory_space<vmem>>, vector<8x128xf32>
    tpu.vector_store %arg9[%c0_7, %c128], %2 {strides = array<i32>} : memref<8x256xf32, #tpu.memory_space<vmem>>, vector<8x128xf32>,
    %c0_8 = arith.constant 0 : index
    %c0_9 = arith.constant 0 : index
    %8 = vector.load %arg9[%c0_8, %c0_9] : memref<8x256xf32, #tpu.memory_space<vmem>>, vector<8x256xf32>
    %cst_10 = arith.constant dense<0.000000e+00> : vector<8x512xf32>
    %9 = tpu.matmul %8, %0, %cst_10 {dimension_numbers = #tpu.dot_dimension_numbers<[1], [0], [0], [1], [0, 0, 1, 1], [], []>} : vector<8x256xf32>, vector<256x512xf32>, vector<8x512xf32> -> vector<8x512xf32>
    %10 = vector.broadcast %1 : vector<1x512xf32> to vector<8x512xf32>
    %11 = arith.addf %9, %10 : vector<8x512xf32>
    %12 = vector.extract_strided_slice %11 {offsets = [0, 0], sizes = [8, 128], strides = [1, 1]} : vector<8x512xf32> to vector<8x128xf32>
    %13 = arith.negf %12 : vector<8x128xf32>
    %14 = math.exp %13 : vector<8x128xf32>
    %cst_11 = arith.constant 1.000000e+00 : f32
    %15 = vector.broadcast %cst_11 : f32 to vector<8x128xf32>
    %16 = arith.addf %15, %14 : vector<8x128xf32>
    %17 = arith.divf %15, %16 : vector<8x128xf32>
    %18 = vector.extract_strided_slice %11 {offsets = [0, 128], sizes = [8, 128], strides = [1, 1]} : vector<8x512xf32> to vector<8x128xf32>
    %19 = arith.negf %18 : vector<8x128xf32>
    %20 = math.exp %19 : vector<8x128xf32>
    %cst_12 = arith.constant 1.000000e+00 : f32
    %21 = vector.broadcast %cst_12 : f32 to vector<8x128xf32>
    %22 = arith.addf %21, %20 : vector<8x128xf32>
    %23 = arith.divf %21, %22 : vector<8x128xf32>
    %24 = vector.extract_strided_slice %11 {offsets = [0, 256], sizes = [8, 128], strides = [1, 1]} : vector<8x512xf32> to vector<8x128xf32>
    %25 = math.tanh %24 : vector<8x128xf32>
    %26 = vector.extract_strided_slice %11 {offsets = [0, 384], sizes = [8, 128], strides = [1, 1]} : vector<8x512xf32> to vector<8x128xf32>
    %27 = arith.negf %26 : vector<8x128xf32>
    %28 = math.exp %27 : vector<8x128xf32>
    %cst_13 = arith.constant 1.000000e+00 : f32
    %29 = vector.broadcast %cst_13 : f32 to vector<8x128xf32>
    %30 = arith.addf %29, %28 : vector<8x128xf32>
    %31 = arith.divf %29, %30 : vector<8x128xf32>
    %32 = arith.mulf %23, %2 : vector<8x128xf32>
    %33 = arith.mulf %17, %25 : vector<8x128xf32>
    %34 = arith.addf %32, %33 : vector<8x128xf32>
    %35 = math.tanh %34 : vector<8x128xf32>
    %36 = arith.mulf %31, %35 : vector<8x128xf32>
    %c0_14 = arith.constant 0 : index
    %c0_15 = arith.constant 0 : index
    %37 = vector.load %arg2[%c0_14, %c0_15] : memref<8x1xi32, #tpu.memory_space<vmem>>, vector<8x1xi32>
    %38 = vector.broadcast %c0_i32 : i32 to vector<8x1xi32>
    %39 = arith.cmpi slt, %38, %37 : vector<8x1xi32>
    %40 = vector.shape_cast %39 : vector<8x1xi1> to vector<8x1xi1>
    %41 = vector.broadcast %40 : vector<8x1xi1> to vector<8x128xi1>
    %42 = arith.select %41, %36, %2 : vector<8x128xi1>, vector<8x128xf32>
    %43 = vector.shape_cast %39 : vector<8x1xi1> to vector<8x1xi1>
    %44 = vector.broadcast %43 : vector<8x1xi1> to vector<8x128xi1>
    %45 = arith.select %44, %34, %2 : vector<8x128xi1>, vector<8x128xf32>
    %cst_16 = arith.constant 0.000000e+00 : f32
    %46 = vector.shape_cast %39 : vector<8x1xi1> to vector<8x1xi1>
    %47 = vector.broadcast %46 : vector<8x1xi1> to vector<8x128xi1>
    %48 = vector.broadcast %cst_16 : f32 to vector<8x128xf32>
    %49 = arith.select %47, %36, %48 : vector<8x128xi1>, vector<8x128xf32>
    %50 = arith.addf %2, %49 : vector<8x128xf32>
    %c1_i32 = arith.constant 1 : i32
    %51 = arith.index_cast %c1_i32 : i32 to index
    %c0_17 = arith.constant 0 : index
    %c0_18 = arith.constant 0 : index
    %52 = vector.load %arg1[%51, %c0_17, %c0_18] : memref<8x8x128xf32, #tpu.memory_space<vmem>>, vector<1x8x128xf32>
    %53 = vector.shape_cast %52 : vector<1x8x128xf32> to vector<8x128xf32>
    %c0_19 = arith.constant 0 : index
    %c0_20 = arith.constant 0 : index
    %54 = vector.load %arg9[%c0_19, %c0_20] : memref<8x256xf32, #tpu.memory_space<vmem>>, vector<8x128xf32>
    tpu.vector_store %arg9[%c0_19, %c0_20], %53 {strides = array<i32>} : memref<8x256xf32, #tpu.memory_space<vmem>>, vector<8x128xf32>,
    %c0_21 = arith.constant 0 : index
    %c128_22 = arith.constant 128 : index
    %55 = vector.load %arg9[%c0_21, %c128_22] : memref<8x256xf32, #tpu.memory_space<vmem>>, vector<8x128xf32>
    tpu.vector_store %arg9[%c0_21, %c128_22], %42 {strides = array<i32>} : memref<8x256xf32, #tpu.memory_space<vmem>>, vector<8x128xf32>,
    %c0_23 = arith.constant 0 : index
    %c0_24 = arith.constant 0 : index
    %56 = vector.load %arg9[%c0_23, %c0_24] : memref<8x256xf32, #tpu.memory_space<vmem>>, vector<8x256xf32>
    %cst_25 = arith.constant dense<0.000000e+00> : vector<8x512xf32>
    %57 = tpu.matmul %56, %0, %cst_25 {dimension_numbers = #tpu.dot_dimension_numbers<[1], [0], [0], [1], [0, 0, 1, 1], [], []>} : vector<8x256xf32>, vector<256x512xf32>, vector<8x512xf32> -> vector<8x512xf32>
    %58 = vector.broadcast %1 : vector<1x512xf32> to vector<8x512xf32>
    %59 = arith.addf %57, %58 : vector<8x512xf32>
    %60 = vector.extract_strided_slice %59 {offsets = [0, 0], sizes = [8, 128], strides = [1, 1]} : vector<8x512xf32> to vector<8x128xf32>
    %61 = arith.negf %60 : vector<8x128xf32>
    %62 = math.exp %61 : vector<8x128xf32>
    %cst_26 = arith.constant 1.000000e+00 : f32
    %63 = vector.broadcast %cst_26 : f32 to vector<8x128xf32>
    %64 = arith.addf %63, %62 : vector<8x128xf32>
    %65 = arith.divf %63, %64 : vector<8x128xf32>
    %66 = vector.extract_strided_slice %59 {offsets = [0, 128], sizes = [8, 128], strides = [1, 1]} : vector<8x512xf32> to vector<8x128xf32>
    %67 = arith.negf %66 : vector<8x128xf32>
    %68 = math.exp %67 : vector<8x128xf32>
    %cst_27 = arith.constant 1.000000e+00 : f32
    %69 = vector.broadcast %cst_27 : f32 to vector<8x128xf32>
    %70 = arith.addf %69, %68 : vector<8x128xf32>
    %71 = arith.divf %69, %70 : vector<8x128xf32>
    %72 = vector.extract_strided_slice %59 {offsets = [0, 256], sizes = [8, 128], strides = [1, 1]} : vector<8x512xf32> to vector<8x128xf32>
    %73 = math.tanh %72 : vector<8x128xf32>
    %74 = vector.extract_strided_slice %59 {offsets = [0, 384], sizes = [8, 128], strides = [1, 1]} : vector<8x512xf32> to vector<8x128xf32>
    %75 = arith.negf %74 : vector<8x128xf32>
    %76 = math.exp %75 : vector<8x128xf32>
    %cst_28 = arith.constant 1.000000e+00 : f32
    %77 = vector.broadcast %cst_28 : f32 to vector<8x128xf32>
    %78 = arith.addf %77, %76 : vector<8x128xf32>
    %79 = arith.divf %77, %78 : vector<8x128xf32>
    %80 = arith.mulf %71, %45 : vector<8x128xf32>
    %81 = arith.mulf %65, %73 : vector<8x128xf32>
    %82 = arith.addf %80, %81 : vector<8x128xf32>
    %83 = math.tanh %82 : vector<8x128xf32>
    %84 = arith.mulf %79, %83 : vector<8x128xf32>
    %c0_29 = arith.constant 0 : index
    %c0_30 = arith.constant 0 : index
    %85 = vector.load %arg2[%c0_29, %c0_30] : memref<8x1xi32, #tpu.memory_space<vmem>>, vector<8x1xi32>
    %86 = vector.broadcast %c1_i32 : i32 to vector<8x1xi32>
    %87 = arith.cmpi slt, %86, %85 : vector<8x1xi32>
    %88 = vector.shape_cast %87 : vector<8x1xi1> to vector<8x1xi1>
    %89 = vector.broadcast %88 : vector<8x1xi1> to vector<8x128xi1>
    %90 = arith.select %89, %84, %42 : vector<8x128xi1>, vector<8x128xf32>
    %91 = vector.shape_cast %87 : vector<8x1xi1> to vector<8x1xi1>
    %92 = vector.broadcast %91 : vector<8x1xi1> to vector<8x128xi1>
    %93 = arith.select %92, %82, %45 : vector<8x128xi1>, vector<8x128xf32>
    %cst_31 = arith.constant 0.000000e+00 : f32
    %94 = vector.shape_cast %87 : vector<8x1xi1> to vector<8x1xi1>
    %95 = vector.broadcast %94 : vector<8x1xi1> to vector<8x128xi1>
    %96 = vector.broadcast %cst_31 : f32 to vector<8x128xf32>
    %97 = arith.select %95, %84, %96 : vector<8x128xi1>, vector<8x128xf32>
    %98 = arith.addf %50, %97 : vector<8x128xf32>
    %c2_i32 = arith.constant 2 : i32
    %99 = arith.index_cast %c2_i32 : i32 to index
    %c0_32 = arith.constant 0 : index
    %c0_33 = arith.constant 0 : index
    %100 = vector.load %arg1[%99, %c0_32, %c0_33] : memref<8x8x128xf32, #tpu.memory_space<vmem>>, vector<1x8x128xf32>
    %101 = vector.shape_cast %100 : vector<1x8x128xf32> to vector<8x128xf32>
    %c0_34 = arith.constant 0 : index
    %c0_35 = arith.constant 0 : index
    %102 = vector.load %arg9[%c0_34, %c0_35] : memref<8x256xf32, #tpu.memory_space<vmem>>, vector<8x128xf32>
    tpu.vector_store %arg9[%c0_34, %c0_35], %101 {strides = array<i32>} : memref<8x256xf32, #tpu.memory_space<vmem>>, vector<8x128xf32>,
    %c0_36 = arith.constant 0 : index
    %c128_37 = arith.constant 128 : index
    %103 = vector.load %arg9[%c0_36, %c128_37] : memref<8x256xf32, #tpu.memory_space<vmem>>, vector<8x128xf32>
    tpu.vector_store %arg9[%c0_36, %c128_37], %90 {strides = array<i32>} : memref<8x256xf32, #tpu.memory_space<vmem>>, vector<8x128xf32>,
    %c0_38 = arith.constant 0 : index
    %c0_39 = arith.constant 0 : index
    %104 = vector.load %arg9[%c0_38, %c0_39] : memref<8x256xf32, #tpu.memory_space<vmem>>, vector<8x256xf32>
    %cst_40 = arith.constant dense<0.000000e+00> : vector<8x512xf32>
    %105 = tpu.matmul %104, %0, %cst_40 {dimension_numbers = #tpu.dot_dimension_numbers<[1], [0], [0], [1], [0, 0, 1, 1], [], []>} : vector<8x256xf32>, vector<256x512xf32>, vector<8x512xf32> -> vector<8x512xf32>
    %106 = vector.broadcast %1 : vector<1x512xf32> to vector<8x512xf32>
    %107 = arith.addf %105, %106 : vector<8x512xf32>
    %108 = vector.extract_strided_slice %107 {offsets = [0, 0], sizes = [8, 128], strides = [1, 1]} : vector<8x512xf32> to vector<8x128xf32>
    %109 = arith.negf %108 : vector<8x128xf32>
    %110 = math.exp %109 : vector<8x128xf32>
    %cst_41 = arith.constant 1.000000e+00 : f32
    %111 = vector.broadcast %cst_41 : f32 to vector<8x128xf32>
    %112 = arith.addf %111, %110 : vector<8x128xf32>
    %113 = arith.divf %111, %112 : vector<8x128xf32>
    %114 = vector.extract_strided_slice %107 {offsets = [0, 128], sizes = [8, 128], strides = [1, 1]} : vector<8x512xf32> to vector<8x128xf32>
    %115 = arith.negf %114 : vector<8x128xf32>
    %116 = math.exp %115 : vector<8x128xf32>
    %cst_42 = arith.constant 1.000000e+00 : f32
    %117 = vector.broadcast %cst_42 : f32 to vector<8x128xf32>
    %118 = arith.addf %117, %116 : vector<8x128xf32>
    %119 = arith.divf %117, %118 : vector<8x128xf32>
    %120 = vector.extract_strided_slice %107 {offsets = [0, 256], sizes = [8, 128], strides = [1, 1]} : vector<8x512xf32> to vector<8x128xf32>
    %121 = math.tanh %120 : vector<8x128xf32>
    %122 = vector.extract_strided_slice %107 {offsets = [0, 384], sizes = [8, 128], strides = [1, 1]} : vector<8x512xf32> to vector<8x128xf32>
    %123 = arith.negf %122 : vector<8x128xf32>
    %124 = math.exp %123 : vector<8x128xf32>
    %cst_43 = arith.constant 1.000000e+00 : f32
    %125 = vector.broadcast %cst_43 : f32 to vector<8x128xf32>
    %126 = arith.addf %125, %124 : vector<8x128xf32>
    %127 = arith.divf %125, %126 : vector<8x128xf32>
    %128 = arith.mulf %119, %93 : vector<8x128xf32>
    %129 = arith.mulf %113, %121 : vector<8x128xf32>
    %130 = arith.addf %128, %129 : vector<8x128xf32>
    %131 = math.tanh %130 : vector<8x128xf32>
    %132 = arith.mulf %127, %131 : vector<8x128xf32>
    %c0_44 = arith.constant 0 : index
    %c0_45 = arith.constant 0 : index
    %133 = vector.load %arg2[%c0_44, %c0_45] : memref<8x1xi32, #tpu.memory_space<vmem>>, vector<8x1xi32>
    %134 = vector.broadcast %c2_i32 : i32 to vector<8x1xi32>
    %135 = arith.cmpi slt, %134, %133 : vector<8x1xi32>
    %136 = vector.shape_cast %135 : vector<8x1xi1> to vector<8x1xi1>
    %137 = vector.broadcast %136 : vector<8x1xi1> to vector<8x128xi1>
    %138 = arith.select %137, %132, %90 : vector<8x128xi1>, vector<8x128xf32>
    %139 = vector.shape_cast %135 : vector<8x1xi1> to vector<8x1xi1>
    %140 = vector.broadcast %139 : vector<8x1xi1> to vector<8x128xi1>
    %141 = arith.select %140, %130, %93 : vector<8x128xi1>, vector<8x128xf32>
    %cst_46 = arith.constant 0.000000e+00 : f32
    %142 = vector.shape_cast %135 : vector<8x1xi1> to vector<8x1xi1>
    %143 = vector.broadcast %142 : vector<8x1xi1> to vector<8x128xi1>
    %144 = vector.broadcast %cst_46 : f32 to vector<8x128xf32>
    %145 = arith.select %143, %132, %144 : vector<8x128xi1>, vector<8x128xf32>
    %146 = arith.addf %98, %145 : vector<8x128xf32>
    %c3_i32 = arith.constant 3 : i32
    %147 = arith.index_cast %c3_i32 : i32 to index
    %c0_47 = arith.constant 0 : index
    %c0_48 = arith.constant 0 : index
    %148 = vector.load %arg1[%147, %c0_47, %c0_48] : memref<8x8x128xf32, #tpu.memory_space<vmem>>, vector<1x8x128xf32>
    %149 = vector.shape_cast %148 : vector<1x8x128xf32> to vector<8x128xf32>
    %c0_49 = arith.constant 0 : index
    %c0_50 = arith.constant 0 : index
    %150 = vector.load %arg9[%c0_49, %c0_50] : memref<8x256xf32, #tpu.memory_space<vmem>>, vector<8x128xf32>
    tpu.vector_store %arg9[%c0_49, %c0_50], %149 {strides = array<i32>} : memref<8x256xf32, #tpu.memory_space<vmem>>, vector<8x128xf32>,
    %c0_51 = arith.constant 0 : index
    %c128_52 = arith.constant 128 : index
    %151 = vector.load %arg9[%c0_51, %c128_52] : memref<8x256xf32, #tpu.memory_space<vmem>>, vector<8x128xf32>
    tpu.vector_store %arg9[%c0_51, %c128_52], %138 {strides = array<i32>} : memref<8x256xf32, #tpu.memory_space<vmem>>, vector<8x128xf32>,
    %c0_53 = arith.constant 0 : index
    %c0_54 = arith.constant 0 : index
    %152 = vector.load %arg9[%c0_53, %c0_54] : memref<8x256xf32, #tpu.memory_space<vmem>>, vector<8x256xf32>
    %cst_55 = arith.constant dense<0.000000e+00> : vector<8x512xf32>
    %153 = tpu.matmul %152, %0, %cst_55 {dimension_numbers = #tpu.dot_dimension_numbers<[1], [0], [0], [1], [0, 0, 1, 1], [], []>} : vector<8x256xf32>, vector<256x512xf32>, vector<8x512xf32> -> vector<8x512xf32>
    %154 = vector.broadcast %1 : vector<1x512xf32> to vector<8x512xf32>
    %155 = arith.addf %153, %154 : vector<8x512xf32>
    %156 = vector.extract_strided_slice %155 {offsets = [0, 0], sizes = [8, 128], strides = [1, 1]} : vector<8x512xf32> to vector<8x128xf32>
    %157 = arith.negf %156 : vector<8x128xf32>
    %158 = math.exp %157 : vector<8x128xf32>
    %cst_56 = arith.constant 1.000000e+00 : f32
    %159 = vector.broadcast %cst_56 : f32 to vector<8x128xf32>
    %160 = arith.addf %159, %158 : vector<8x128xf32>
    %161 = arith.divf %159, %160 : vector<8x128xf32>
    %162 = vector.extract_strided_slice %155 {offsets = [0, 128], sizes = [8, 128], strides = [1, 1]} : vector<8x512xf32> to vector<8x128xf32>
    %163 = arith.negf %162 : vector<8x128xf32>
    %164 = math.exp %163 : vector<8x128xf32>
    %cst_57 = arith.constant 1.000000e+00 : f32
    %165 = vector.broadcast %cst_57 : f32 to vector<8x128xf32>
    %166 = arith.addf %165, %164 : vector<8x128xf32>
    %167 = arith.divf %165, %166 : vector<8x128xf32>
    %168 = vector.extract_strided_slice %155 {offsets = [0, 256], sizes = [8, 128], strides = [1, 1]} : vector<8x512xf32> to vector<8x128xf32>
    %169 = math.tanh %168 : vector<8x128xf32>
    %170 = vector.extract_strided_slice %155 {offsets = [0, 384], sizes = [8, 128], strides = [1, 1]} : vector<8x512xf32> to vector<8x128xf32>
    %171 = arith.negf %170 : vector<8x128xf32>
    %172 = math.exp %171 : vector<8x128xf32>
    %cst_58 = arith.constant 1.000000e+00 : f32
    %173 = vector.broadcast %cst_58 : f32 to vector<8x128xf32>
    %174 = arith.addf %173, %172 : vector<8x128xf32>
    %175 = arith.divf %173, %174 : vector<8x128xf32>
    %176 = arith.mulf %167, %141 : vector<8x128xf32>
    %177 = arith.mulf %161, %169 : vector<8x128xf32>
    %178 = arith.addf %176, %177 : vector<8x128xf32>
    %179 = math.tanh %178 : vector<8x128xf32>
    %180 = arith.mulf %175, %179 : vector<8x128xf32>
    %c0_59 = arith.constant 0 : index
    %c0_60 = arith.constant 0 : index
    %181 = vector.load %arg2[%c0_59, %c0_60] : memref<8x1xi32, #tpu.memory_space<vmem>>, vector<8x1xi32>
    %182 = vector.broadcast %c3_i32 : i32 to vector<8x1xi32>
    %183 = arith.cmpi slt, %182, %181 : vector<8x1xi32>
    %184 = vector.shape_cast %183 : vector<8x1xi1> to vector<8x1xi1>
    %185 = vector.broadcast %184 : vector<8x1xi1> to vector<8x128xi1>
    %186 = arith.select %185, %180, %138 : vector<8x128xi1>, vector<8x128xf32>
    %187 = vector.shape_cast %183 : vector<8x1xi1> to vector<8x1xi1>
    %188 = vector.broadcast %187 : vector<8x1xi1> to vector<8x128xi1>
    %189 = arith.select %188, %178, %141 : vector<8x128xi1>, vector<8x128xf32>
    %cst_61 = arith.constant 0.000000e+00 : f32
    %190 = vector.shape_cast %183 : vector<8x1xi1> to vector<8x1xi1>
    %191 = vector.broadcast %190 : vector<8x1xi1> to vector<8x128xi1>
    %192 = vector.broadcast %cst_61 : f32 to vector<8x128xf32>
    %193 = arith.select %191, %180, %192 : vector<8x128xi1>, vector<8x128xf32>
    %194 = arith.addf %146, %193 : vector<8x128xf32>
    %c4_i32 = arith.constant 4 : i32
    %195 = arith.index_cast %c4_i32 : i32 to index
    %c0_62 = arith.constant 0 : index
    %c0_63 = arith.constant 0 : index
    %196 = vector.load %arg1[%195, %c0_62, %c0_63] : memref<8x8x128xf32, #tpu.memory_space<vmem>>, vector<1x8x128xf32>
    %197 = vector.shape_cast %196 : vector<1x8x128xf32> to vector<8x128xf32>
    %c0_64 = arith.constant 0 : index
    %c0_65 = arith.constant 0 : index
    %198 = vector.load %arg9[%c0_64, %c0_65] : memref<8x256xf32, #tpu.memory_space<vmem>>, vector<8x128xf32>
    tpu.vector_store %arg9[%c0_64, %c0_65], %197 {strides = array<i32>} : memref<8x256xf32, #tpu.memory_space<vmem>>, vector<8x128xf32>,
    %c0_66 = arith.constant 0 : index
    %c128_67 = arith.constant 128 : index
    %199 = vector.load %arg9[%c0_66, %c128_67] : memref<8x256xf32, #tpu.memory_space<vmem>>, vector<8x128xf32>
    tpu.vector_store %arg9[%c0_66, %c128_67], %186 {strides = array<i32>} : memref<8x256xf32, #tpu.memory_space<vmem>>, vector<8x128xf32>,
    %c0_68 = arith.constant 0 : index
    %c0_69 = arith.constant 0 : index
    %200 = vector.load %arg9[%c0_68, %c0_69] : memref<8x256xf32, #tpu.memory_space<vmem>>, vector<8x256xf32>
    %cst_70 = arith.constant dense<0.000000e+00> : vector<8x512xf32>
    %201 = tpu.matmul %200, %0, %cst_70 {dimension_numbers = #tpu.dot_dimension_numbers<[1], [0], [0], [1], [0, 0, 1, 1], [], []>} : vector<8x256xf32>, vector<256x512xf32>, vector<8x512xf32> -> vector<8x512xf32>
    %202 = vector.broadcast %1 : vector<1x512xf32> to vector<8x512xf32>
    %203 = arith.addf %201, %202 : vector<8x512xf32>
    %204 = vector.extract_strided_slice %203 {offsets = [0, 0], sizes = [8, 128], strides = [1, 1]} : vector<8x512xf32> to vector<8x128xf32>
    %205 = arith.negf %204 : vector<8x128xf32>
    %206 = math.exp %205 : vector<8x128xf32>
    %cst_71 = arith.constant 1.000000e+00 : f32
    %207 = vector.broadcast %cst_71 : f32 to vector<8x128xf32>
    %208 = arith.addf %207, %206 : vector<8x128xf32>
    %209 = arith.divf %207, %208 : vector<8x128xf32>
    %210 = vector.extract_strided_slice %203 {offsets = [0, 128], sizes = [8, 128], strides = [1, 1]} : vector<8x512xf32> to vector<8x128xf32>
    %211 = arith.negf %210 : vector<8x128xf32>
    %212 = math.exp %211 : vector<8x128xf32>
    %cst_72 = arith.constant 1.000000e+00 : f32
    %213 = vector.broadcast %cst_72 : f32 to vector<8x128xf32>
    %214 = arith.addf %213, %212 : vector<8x128xf32>
    %215 = arith.divf %213, %214 : vector<8x128xf32>
    %216 = vector.extract_strided_slice %203 {offsets = [0, 256], sizes = [8, 128], strides = [1, 1]} : vector<8x512xf32> to vector<8x128xf32>
    %217 = math.tanh %216 : vector<8x128xf32>
    %218 = vector.extract_strided_slice %203 {offsets = [0, 384], sizes = [8, 128], strides = [1, 1]} : vector<8x512xf32> to vector<8x128xf32>
    %219 = arith.negf %218 : vector<8x128xf32>
    %220 = math.exp %219 : vector<8x128xf32>
    %cst_73 = arith.constant 1.000000e+00 : f32
    %221 = vector.broadcast %cst_73 : f32 to vector<8x128xf32>
    %222 = arith.addf %221, %220 : vector<8x128xf32>
    %223 = arith.divf %221, %222 : vector<8x128xf32>
    %224 = arith.mulf %215, %189 : vector<8x128xf32>
    %225 = arith.mulf %209, %217 : vector<8x128xf32>
    %226 = arith.addf %224, %225 : vector<8x128xf32>
    %227 = math.tanh %226 : vector<8x128xf32>
    %228 = arith.mulf %223, %227 : vector<8x128xf32>
    %c0_74 = arith.constant 0 : index
    %c0_75 = arith.constant 0 : index
    %229 = vector.load %arg2[%c0_74, %c0_75] : memref<8x1xi32, #tpu.memory_space<vmem>>, vector<8x1xi32>
    %230 = vector.broadcast %c4_i32 : i32 to vector<8x1xi32>
    %231 = arith.cmpi slt, %230, %229 : vector<8x1xi32>
    %232 = vector.shape_cast %231 : vector<8x1xi1> to vector<8x1xi1>
    %233 = vector.broadcast %232 : vector<8x1xi1> to vector<8x128xi1>
    %234 = arith.select %233, %228, %186 : vector<8x128xi1>, vector<8x128xf32>
    %235 = vector.shape_cast %231 : vector<8x1xi1> to vector<8x1xi1>
    %236 = vector.broadcast %235 : vector<8x1xi1> to vector<8x128xi1>
    %237 = arith.select %236, %226, %189 : vector<8x128xi1>, vector<8x128xf32>
    %cst_76 = arith.constant 0.000000e+00 : f32
    %238 = vector.shape_cast %231 : vector<8x1xi1> to vector<8x1xi1>
    %239 = vector.broadcast %238 : vector<8x1xi1> to vector<8x128xi1>
    %240 = vector.broadcast %cst_76 : f32 to vector<8x128xf32>
    %241 = arith.select %239, %228, %240 : vector<8x128xi1>, vector<8x128xf32>
    %242 = arith.addf %194, %241 : vector<8x128xf32>
    %c5_i32 = arith.constant 5 : i32
    %243 = arith.index_cast %c5_i32 : i32 to index
    %c0_77 = arith.constant 0 : index
    %c0_78 = arith.constant 0 : index
    %244 = vector.load %arg1[%243, %c0_77, %c0_78] : memref<8x8x128xf32, #tpu.memory_space<vmem>>, vector<1x8x128xf32>
    %245 = vector.shape_cast %244 : vector<1x8x128xf32> to vector<8x128xf32>
    %c0_79 = arith.constant 0 : index
    %c0_80 = arith.constant 0 : index
    %246 = vector.load %arg9[%c0_79, %c0_80] : memref<8x256xf32, #tpu.memory_space<vmem>>, vector<8x128xf32>
    tpu.vector_store %arg9[%c0_79, %c0_80], %245 {strides = array<i32>} : memref<8x256xf32, #tpu.memory_space<vmem>>, vector<8x128xf32>,
    %c0_81 = arith.constant 0 : index
    %c128_82 = arith.constant 128 : index
    %247 = vector.load %arg9[%c0_81, %c128_82] : memref<8x256xf32, #tpu.memory_space<vmem>>, vector<8x128xf32>
    tpu.vector_store %arg9[%c0_81, %c128_82], %234 {strides = array<i32>} : memref<8x256xf32, #tpu.memory_space<vmem>>, vector<8x128xf32>,
    %c0_83 = arith.constant 0 : index
    %c0_84 = arith.constant 0 : index
    %248 = vector.load %arg9[%c0_83, %c0_84] : memref<8x256xf32, #tpu.memory_space<vmem>>, vector<8x256xf32>
    %cst_85 = arith.constant dense<0.000000e+00> : vector<8x512xf32>
    %249 = tpu.matmul %248, %0, %cst_85 {dimension_numbers = #tpu.dot_dimension_numbers<[1], [0], [0], [1], [0, 0, 1, 1], [], []>} : vector<8x256xf32>, vector<256x512xf32>, vector<8x512xf32> -> vector<8x512xf32>
    %250 = vector.broadcast %1 : vector<1x512xf32> to vector<8x512xf32>
    %251 = arith.addf %249, %250 : vector<8x512xf32>
    %252 = vector.extract_strided_slice %251 {offsets = [0, 0], sizes = [8, 128], strides = [1, 1]} : vector<8x512xf32> to vector<8x128xf32>
    %253 = arith.negf %252 : vector<8x128xf32>
    %254 = math.exp %253 : vector<8x128xf32>
    %cst_86 = arith.constant 1.000000e+00 : f32
    %255 = vector.broadcast %cst_86 : f32 to vector<8x128xf32>
    %256 = arith.addf %255, %254 : vector<8x128xf32>
    %257 = arith.divf %255, %256 : vector<8x128xf32>
    %258 = vector.extract_strided_slice %251 {offsets = [0, 128], sizes = [8, 128], strides = [1, 1]} : vector<8x512xf32> to vector<8x128xf32>
    %259 = arith.negf %258 : vector<8x128xf32>
    %260 = math.exp %259 : vector<8x128xf32>
    %cst_87 = arith.constant 1.000000e+00 : f32
    %261 = vector.broadcast %cst_87 : f32 to vector<8x128xf32>
    %262 = arith.addf %261, %260 : vector<8x128xf32>
    %263 = arith.divf %261, %262 : vector<8x128xf32>
    %264 = vector.extract_strided_slice %251 {offsets = [0, 256], sizes = [8, 128], strides = [1, 1]} : vector<8x512xf32> to vector<8x128xf32>
    %265 = math.tanh %264 : vector<8x128xf32>
    %266 = vector.extract_strided_slice %251 {offsets = [0, 384], sizes = [8, 128], strides = [1, 1]} : vector<8x512xf32> to vector<8x128xf32>
    %267 = arith.negf %266 : vector<8x128xf32>
    %268 = math.exp %267 : vector<8x128xf32>
    %cst_88 = arith.constant 1.000000e+00 : f32
    %269 = vector.broadcast %cst_88 : f32 to vector<8x128xf32>
    %270 = arith.addf %269, %268 : vector<8x128xf32>
    %271 = arith.divf %269, %270 : vector<8x128xf32>
    %272 = arith.mulf %263, %237 : vector<8x128xf32>
    %273 = arith.mulf %257, %265 : vector<8x128xf32>
    %274 = arith.addf %272, %273 : vector<8x128xf32>
    %275 = math.tanh %274 : vector<8x128xf32>
    %276 = arith.mulf %271, %275 : vector<8x128xf32>
    %c0_89 = arith.constant 0 : index
    %c0_90 = arith.constant 0 : index
    %277 = vector.load %arg2[%c0_89, %c0_90] : memref<8x1xi32, #tpu.memory_space<vmem>>, vector<8x1xi32>
    %278 = vector.broadcast %c5_i32 : i32 to vector<8x1xi32>
    %279 = arith.cmpi slt, %278, %277 : vector<8x1xi32>
    %280 = vector.shape_cast %279 : vector<8x1xi1> to vector<8x1xi1>
    %281 = vector.broadcast %280 : vector<8x1xi1> to vector<8x128xi1>
    %282 = arith.select %281, %276, %234 : vector<8x128xi1>, vector<8x128xf32>
    %283 = vector.shape_cast %279 : vector<8x1xi1> to vector<8x1xi1>
    %284 = vector.broadcast %283 : vector<8x1xi1> to vector<8x128xi1>
    %285 = arith.select %284, %274, %237 : vector<8x128xi1>, vector<8x128xf32>
    %cst_91 = arith.constant 0.000000e+00 : f32
    %286 = vector.shape_cast %279 : vector<8x1xi1> to vector<8x1xi1>
    %287 = vector.broadcast %286 : vector<8x1xi1> to vector<8x128xi1>
    %288 = vector.broadcast %cst_91 : f32 to vector<8x128xf32>
    %289 = arith.select %287, %276, %288 : vector<8x128xi1>, vector<8x128xf32>
    %290 = arith.addf %242, %289 : vector<8x128xf32>
    %c6_i32 = arith.constant 6 : i32
    %291 = arith.index_cast %c6_i32 : i32 to index
    %c0_92 = arith.constant 0 : index
    %c0_93 = arith.constant 0 : index
    %292 = vector.load %arg1[%291, %c0_92, %c0_93] : memref<8x8x128xf32, #tpu.memory_space<vmem>>, vector<1x8x128xf32>
    %293 = vector.shape_cast %292 : vector<1x8x128xf32> to vector<8x128xf32>
    %c0_94 = arith.constant 0 : index
    %c0_95 = arith.constant 0 : index
    %294 = vector.load %arg9[%c0_94, %c0_95] : memref<8x256xf32, #tpu.memory_space<vmem>>, vector<8x128xf32>
    tpu.vector_store %arg9[%c0_94, %c0_95], %293 {strides = array<i32>} : memref<8x256xf32, #tpu.memory_space<vmem>>, vector<8x128xf32>,
    %c0_96 = arith.constant 0 : index
    %c128_97 = arith.constant 128 : index
    %295 = vector.load %arg9[%c0_96, %c128_97] : memref<8x256xf32, #tpu.memory_space<vmem>>, vector<8x128xf32>
    tpu.vector_store %arg9[%c0_96, %c128_97], %282 {strides = array<i32>} : memref<8x256xf32, #tpu.memory_space<vmem>>, vector<8x128xf32>,
    %c0_98 = arith.constant 0 : index
    %c0_99 = arith.constant 0 : index
    %296 = vector.load %arg9[%c0_98, %c0_99] : memref<8x256xf32, #tpu.memory_space<vmem>>, vector<8x256xf32>
    %cst_100 = arith.constant dense<0.000000e+00> : vector<8x512xf32>
    %297 = tpu.matmul %296, %0, %cst_100 {dimension_numbers = #tpu.dot_dimension_numbers<[1], [0], [0], [1], [0, 0, 1, 1], [], []>} : vector<8x256xf32>, vector<256x512xf32>, vector<8x512xf32> -> vector<8x512xf32>
    %298 = vector.broadcast %1 : vector<1x512xf32> to vector<8x512xf32>
    %299 = arith.addf %297, %298 : vector<8x512xf32>
    %300 = vector.extract_strided_slice %299 {offsets = [0, 0], sizes = [8, 128], strides = [1, 1]} : vector<8x512xf32> to vector<8x128xf32>
    %301 = arith.negf %300 : vector<8x128xf32>
    %302 = math.exp %301 : vector<8x128xf32>
    %cst_101 = arith.constant 1.000000e+00 : f32
    %303 = vector.broadcast %cst_101 : f32 to vector<8x128xf32>
    %304 = arith.addf %303, %302 : vector<8x128xf32>
    %305 = arith.divf %303, %304 : vector<8x128xf32>
    %306 = vector.extract_strided_slice %299 {offsets = [0, 128], sizes = [8, 128], strides = [1, 1]} : vector<8x512xf32> to vector<8x128xf32>
    %307 = arith.negf %306 : vector<8x128xf32>
    %308 = math.exp %307 : vector<8x128xf32>
    %cst_102 = arith.constant 1.000000e+00 : f32
    %309 = vector.broadcast %cst_102 : f32 to vector<8x128xf32>
    %310 = arith.addf %309, %308 : vector<8x128xf32>
    %311 = arith.divf %309, %310 : vector<8x128xf32>
    %312 = vector.extract_strided_slice %299 {offsets = [0, 256], sizes = [8, 128], strides = [1, 1]} : vector<8x512xf32> to vector<8x128xf32>
    %313 = math.tanh %312 : vector<8x128xf32>
    %314 = vector.extract_strided_slice %299 {offsets = [0, 384], sizes = [8, 128], strides = [1, 1]} : vector<8x512xf32> to vector<8x128xf32>
    %315 = arith.negf %314 : vector<8x128xf32>
    %316 = math.exp %315 : vector<8x128xf32>
    %cst_103 = arith.constant 1.000000e+00 : f32
    %317 = vector.broadcast %cst_103 : f32 to vector<8x128xf32>
    %318 = arith.addf %317, %316 : vector<8x128xf32>
    %319 = arith.divf %317, %318 : vector<8x128xf32>
    %320 = arith.mulf %311, %285 : vector<8x128xf32>
    %321 = arith.mulf %305, %313 : vector<8x128xf32>
    %322 = arith.addf %320, %321 : vector<8x128xf32>
    %323 = math.tanh %322 : vector<8x128xf32>
    %324 = arith.mulf %319, %323 : vector<8x128xf32>
    %c0_104 = arith.constant 0 : index
    %c0_105 = arith.constant 0 : index
    %325 = vector.load %arg2[%c0_104, %c0_105] : memref<8x1xi32, #tpu.memory_space<vmem>>, vector<8x1xi32>
    %326 = vector.broadcast %c6_i32 : i32 to vector<8x1xi32>
    %327 = arith.cmpi slt, %326, %325 : vector<8x1xi32>
    %328 = vector.shape_cast %327 : vector<8x1xi1> to vector<8x1xi1>
    %329 = vector.broadcast %328 : vector<8x1xi1> to vector<8x128xi1>
    %330 = arith.select %329, %324, %282 : vector<8x128xi1>, vector<8x128xf32>
    %331 = vector.shape_cast %327 : vector<8x1xi1> to vector<8x1xi1>
    %332 = vector.broadcast %331 : vector<8x1xi1> to vector<8x128xi1>
    %333 = arith.select %332, %322, %285 : vector<8x128xi1>, vector<8x128xf32>
    %cst_106 = arith.constant 0.000000e+00 : f32
    %334 = vector.shape_cast %327 : vector<8x1xi1> to vector<8x1xi1>
    %335 = vector.broadcast %334 : vector<8x1xi1> to vector<8x128xi1>
    %336 = vector.broadcast %cst_106 : f32 to vector<8x128xf32>
    %337 = arith.select %335, %324, %336 : vector<8x128xi1>, vector<8x128xf32>
    %338 = arith.addf %290, %337 : vector<8x128xf32>
    %c7_i32 = arith.constant 7 : i32
    %339 = arith.index_cast %c7_i32 : i32 to index
    %c0_107 = arith.constant 0 : index
    %c0_108 = arith.constant 0 : index
    %340 = vector.load %arg1[%339, %c0_107, %c0_108] : memref<8x8x128xf32, #tpu.memory_space<vmem>>, vector<1x8x128xf32>
    %341 = vector.shape_cast %340 : vector<1x8x128xf32> to vector<8x128xf32>
    %c0_109 = arith.constant 0 : index
    %c0_110 = arith.constant 0 : index
    %342 = vector.load %arg9[%c0_109, %c0_110] : memref<8x256xf32, #tpu.memory_space<vmem>>, vector<8x128xf32>
    tpu.vector_store %arg9[%c0_109, %c0_110], %341 {strides = array<i32>} : memref<8x256xf32, #tpu.memory_space<vmem>>, vector<8x128xf32>,
    %c0_111 = arith.constant 0 : index
    %c128_112 = arith.constant 128 : index
    %343 = vector.load %arg9[%c0_111, %c128_112] : memref<8x256xf32, #tpu.memory_space<vmem>>, vector<8x128xf32>
    tpu.vector_store %arg9[%c0_111, %c128_112], %330 {strides = array<i32>} : memref<8x256xf32, #tpu.memory_space<vmem>>, vector<8x128xf32>,
    %c0_113 = arith.constant 0 : index
    %c0_114 = arith.constant 0 : index
    %344 = vector.load %arg9[%c0_113, %c0_114] : memref<8x256xf32, #tpu.memory_space<vmem>>, vector<8x256xf32>
    %cst_115 = arith.constant dense<0.000000e+00> : vector<8x512xf32>
    %345 = tpu.matmul %344, %0, %cst_115 {dimension_numbers = #tpu.dot_dimension_numbers<[1], [0], [0], [1], [0, 0, 1, 1], [], []>} : vector<8x256xf32>, vector<256x512xf32>, vector<8x512xf32> -> vector<8x512xf32>
    %346 = vector.broadcast %1 : vector<1x512xf32> to vector<8x512xf32>
    %347 = arith.addf %345, %346 : vector<8x512xf32>
    %348 = vector.extract_strided_slice %347 {offsets = [0, 0], sizes = [8, 128], strides = [1, 1]} : vector<8x512xf32> to vector<8x128xf32>
    %349 = arith.negf %348 : vector<8x128xf32>
    %350 = math.exp %349 : vector<8x128xf32>
    %cst_116 = arith.constant 1.000000e+00 : f32
    %351 = vector.broadcast %cst_116 : f32 to vector<8x128xf32>
    %352 = arith.addf %351, %350 : vector<8x128xf32>
    %353 = arith.divf %351, %352 : vector<8x128xf32>
    %354 = vector.extract_strided_slice %347 {offsets = [0, 128], sizes = [8, 128], strides = [1, 1]} : vector<8x512xf32> to vector<8x128xf32>
    %355 = arith.negf %354 : vector<8x128xf32>
    %356 = math.exp %355 : vector<8x128xf32>
    %cst_117 = arith.constant 1.000000e+00 : f32
    %357 = vector.broadcast %cst_117 : f32 to vector<8x128xf32>
    %358 = arith.addf %357, %356 : vector<8x128xf32>
    %359 = arith.divf %357, %358 : vector<8x128xf32>
    %360 = vector.extract_strided_slice %347 {offsets = [0, 256], sizes = [8, 128], strides = [1, 1]} : vector<8x512xf32> to vector<8x128xf32>
    %361 = math.tanh %360 : vector<8x128xf32>
    %362 = vector.extract_strided_slice %347 {offsets = [0, 384], sizes = [8, 128], strides = [1, 1]} : vector<8x512xf32> to vector<8x128xf32>
    %363 = arith.negf %362 : vector<8x128xf32>
    %364 = math.exp %363 : vector<8x128xf32>
    %cst_118 = arith.constant 1.000000e+00 : f32
    %365 = vector.broadcast %cst_118 : f32 to vector<8x128xf32>
    %366 = arith.addf %365, %364 : vector<8x128xf32>
    %367 = arith.divf %365, %366 : vector<8x128xf32>
    %368 = arith.mulf %359, %333 : vector<8x128xf32>
    %369 = arith.mulf %353, %361 : vector<8x128xf32>
    %370 = arith.addf %368, %369 : vector<8x128xf32>
    %371 = math.tanh %370 : vector<8x128xf32>
    %372 = arith.mulf %367, %371 : vector<8x128xf32>
    %c0_119 = arith.constant 0 : index
    %c0_120 = arith.constant 0 : index
    %373 = vector.load %arg2[%c0_119, %c0_120] : memref<8x1xi32, #tpu.memory_space<vmem>>, vector<8x1xi32>
    %374 = vector.broadcast %c7_i32 : i32 to vector<8x1xi32>
    %375 = arith.cmpi slt, %374, %373 : vector<8x1xi32>
    %376 = vector.shape_cast %375 : vector<8x1xi1> to vector<8x1xi1>
    %377 = vector.broadcast %376 : vector<8x1xi1> to vector<8x128xi1>
    %378 = arith.select %377, %372, %330 : vector<8x128xi1>, vector<8x128xf32>
    %379 = vector.shape_cast %375 : vector<8x1xi1> to vector<8x1xi1>
    %380 = vector.broadcast %379 : vector<8x1xi1> to vector<8x128xi1>
    %381 = arith.select %380, %370, %333 : vector<8x128xi1>, vector<8x128xf32>
    %cst_121 = arith.constant 0.000000e+00 : f32
    %382 = vector.shape_cast %375 : vector<8x1xi1> to vector<8x1xi1>
    %383 = vector.broadcast %382 : vector<8x1xi1> to vector<8x128xi1>
    %384 = vector.broadcast %cst_121 : f32 to vector<8x128xf32>
    %385 = arith.select %383, %372, %384 : vector<8x128xi1>, vector<8x128xf32>
    %386 = arith.addf %338, %385 : vector<8x128xf32>
    %c8_i32 = arith.constant 8 : i32
    %c0_122 = arith.constant 0 : index
    %c0_123 = arith.constant 0 : index
    %387 = vector.load %arg3[%c0_122, %c0_123] : memref<8x1xf32, #tpu.memory_space<vmem>>, vector<8x1xf32>
    %388 = vector.broadcast %387 : vector<8x1xf32> to vector<8x128xf32>
    %389 = arith.mulf %386, %388 : vector<8x128xf32>
    %c0_124 = arith.constant 0 : index
    %c0_125 = arith.constant 0 : index
    %390 = vector.load %arg6[%c0_124, %c0_125] : memref<128x4xf32, #tpu.memory_space<vmem>>, vector<128x4xf32>
    %cst_126 = arith.constant dense<0.000000e+00> : vector<8x4xf32>
    %391 = tpu.matmul %389, %390, %cst_126 {dimension_numbers = #tpu.dot_dimension_numbers<[1], [0], [0], [1], [0, 0, 1, 1], [], []>} : vector<8x128xf32>, vector<128x4xf32>, vector<8x4xf32> -> vector<8x4xf32>
    %c0_127 = arith.constant 0 : index
    %c0_128 = arith.constant 0 : index
    %392 = vector.load %arg7[%c0_127, %c0_128] : memref<1x4xf32, #tpu.memory_space<vmem>>, vector<1x4xf32>
    %393 = vector.broadcast %392 : vector<1x4xf32> to vector<8x4xf32>
    %394 = arith.addf %391, %393 : vector<8x4xf32>
    %c0_129 = arith.constant 0 : index
    %c0_130 = arith.constant 0 : index
    %395 = vector.load %arg8[%c0_129, %c0_130] : memref<8x4xf32, #tpu.memory_space<vmem>>, vector<8x4xf32>
    tpu.vector_store %arg8[%c0_129, %c0_130], %394 {strides = array<i32>} : memref<8x4xf32, #tpu.memory_space<vmem>>, vector<8x4xf32>,
    return
  }
  func.func @transform_0(%arg0: i32) -> (i32, i32, i32) {
    %c0_i32 = arith.constant 0 : i32
    %c0_i32_0 = arith.constant 0 : i32
    %c0_i32_1 = arith.constant 0 : i32
    %c0_i32_2 = arith.constant 0 : i32
    return %c0_i32, %c0_i32_0, %c0_i32_1 : i32, i32, i32
  }
  func.func @transform_1(%arg0: i32) -> (i32, i32) {
    %c0_i32 = arith.constant 0 : i32
    %c0_i32_0 = arith.constant 0 : i32
    %c0_i32_1 = arith.constant 0 : i32
    return %c0_i32, %c0_i32_0 : i32, i32
  }
  func.func @transform_2(%arg0: i32) -> (i32, i32) {
    %c0_i32 = arith.constant 0 : i32
    %c0_i32_0 = arith.constant 0 : i32
    %c0_i32_1 = arith.constant 0 : i32
    return %c0_i32, %c0_i32_0 : i32, i32
  }
  func.func @transform_3(%arg0: i32) -> (i32, i32) {
    %c0_i32 = arith.constant 0 : i32
    %c0_i32_0 = arith.constant 0 : i32
    %c0_i32_1 = arith.constant 0 : i32
    return %c0_i32, %c0_i32_0 : i32, i32
  }
  func.func @transform_4(%arg0: i32) -> (i32, i32) {
    %c0_i32 = arith.constant 0 : i32
    %c0_i32_0 = arith.constant 0 : i32
    %c0_i32_1 = arith.constant 0 : i32
    return %c0_i32, %c0_i32_0 : i32, i32
  }
  func.func @transform_5(%arg0: i32) -> (i32, i32) {
    %c0_i32 = arith.constant 0 : i32
    %c0_i32_0 = arith.constant 0 : i32
    %c0_i32_1 = arith.constant 0 : i32
    return %c0_i32, %c0_i32_0 : i32, i32
  }
  func.func @transform_6(%arg0: i32) -> (i32, i32) {
    %c0_i32 = arith.constant 0 : i32
    %c0_i32_0 = arith.constant 0 : i32
    %c0_i32_1 = arith.constant 0 : i32
    return %c0_i32, %c0_i32_0 : i32, i32
  }
  func.func @transform_7(%arg0: i32) -> (i32, i32) {
    %c0_i32 = arith.constant 0 : i32
    %c0_i32_0 = arith.constant 0 : i32
    %c0_i32_1 = arith.constant 0 : i32
    return %c0_i32, %c0_i32_0 : i32, i32
  }
}

</mosaic_0001>

<llo_original>
// kernel: tpu_custom_call.1
$region0: #{tpu_custom_call.1}
  #allocation0 [shape = 'u32[]', space=smem, size = 0x4, offset = 0x4, fixed_abs, tag = 'smem constant byte address 0x4 - core index']
  #allocation1 [shape = 'u32[72,128]{1,0:T(1,128)}', space=vmem, size = 0x9000, scoped, tag = 'internal scratch']
  #allocation2 [shape = 'f32[8,256]{1,0:T(8,128)}', space=vmem, size = 0x2000, scoped, tag = 'scratch operand']
  %s0 = inlined_call_operand.vmem [shape: f32[8,8,128], index: 0, kind: input, shape index: {}]
  %s1 = inlined_call_operand.vmem [shape: s32[8,1], index: 1, kind: input, shape index: {}]
  %s2 = inlined_call_operand.vmem [shape: f32[8,1], index: 2, kind: input, shape index: {}]
  %s3 = inlined_call_operand.hbm [shape: f32[256,512], index: 3, kind: input, shape index: {}]
  %s4 = inlined_call_operand.vmem [shape: f32[1,512], index: 4, kind: input, shape index: {}]
  %s5 = inlined_call_operand.vmem [shape: f32[128,4], index: 5, kind: input, shape index: {}]
  %s6 = inlined_call_operand.vmem [shape: f32[1,4], index: 6, kind: input, shape index: {}]
  %s7 = inlined_call_operand.vmem [shape: f32[8,4], index: 7, kind: output, shape index: {}]
  %s8 = sld [smem:[#allocation0]]
  $region42: #{tpu_custom_call.1} parent=0
    _
  %s10 = ssub.s32 1, %s8
  %s11 = scalar_select 0, %s10, %s8
  $region1: #{tpu_custom_call.1} parent=0
    #allocation3 [shape = 'u8[524288]{0}', space=vmem, size = 0x80000, scoped, tag = 'input window, operand 3, single buffered']
    #allocation4 [shape = 's32[1]{0}', space=sflag, size = 0x4, scoped, tag = 'scoped memory for tpu_custom_call.1']
    %12 = vsyncpa [#allocation4], 0
    // Predicated region
    $region2: #{tpu_custom_call.1} parent=1 // pred_check
      _
    $region3: #{tpu_custom_call.1} parent=1 // pred_check_branch
      %14 = sbr.rel (0) target = $region5
    $region4: #{tpu_custom_call.1} parent=1 // pred_region
      _
    $region5: #{tpu_custom_call.1} parent=1 // pred_fallthru
      _
    // Predicated region
    $region6: #{tpu_custom_call.1} parent=1 // pred_check
      _
    $region7: #{tpu_custom_call.1} parent=1 // pred_check_branch
      %16 = sbr.rel (0) target = $region9
    $region8: #{tpu_custom_call.1} parent=1 // pred_region
      _
    $region9: #{tpu_custom_call.1} parent=1 // pred_fallthru
      _
    // Predicated region
    $region10: #{tpu_custom_call.1} parent=1 // pred_check
      _
    $region11: #{tpu_custom_call.1} parent=1 // pred_check_branch
      %18 = sbr.rel (0) target = $region13
    $region12: #{tpu_custom_call.1} parent=1 // pred_region
      _
    $region13: #{tpu_custom_call.1} parent=1 // pred_fallthru
      _
    // Predicated region
    $region14: #{tpu_custom_call.1} parent=1 // pred_check
      _
    $region15: #{tpu_custom_call.1} parent=1 // pred_check_branch
      %20 = sbr.rel (0) target = $region17
    $region16: #{tpu_custom_call.1} parent=1 // pred_region
      %22 = vsyncadd [#allocation4], 0
      %s23 = sshll.u32 %s3, 4
      %s24 = int_to_ptr.hbm [resolvable:$true] %s23
      %s25 = sshll.u32 [#allocation3], 4
      %s26 = int_to_ptr.vmem [resolvable:$true] %s25
      %31 = dma.hbm_to_vmem [thread:$0]  %s24, 16384, %s26, [#allocation4], 512, 512, 32
    $region17: #{tpu_custom_call.1} parent=1 // pred_fallthru
      _
    // Predicated region
    $region18: #{tpu_custom_call.1} parent=1 // pred_check
      _
    $region19: #{tpu_custom_call.1} parent=1 // pred_check_branch
      %33 = sbr.rel (0) target = $region21
    $region20: #{tpu_custom_call.1} parent=1 // pred_region
      _
    $region21: #{tpu_custom_call.1} parent=1 // pred_fallthru
      _
    // Predicated region
    $region22: #{tpu_custom_call.1} parent=1 // pred_check
      _
    $region23: #{tpu_custom_call.1} parent=1 // pred_check_branch
      %35 = sbr.rel (0) target = $region25
    $region24: #{tpu_custom_call.1} parent=1 // pred_region
      _
    $region25: #{tpu_custom_call.1} parent=1 // pred_fallthru
      _
    // Predicated region
    $region26: #{tpu_custom_call.1} parent=1 // pred_check
      _
    $region27: #{tpu_custom_call.1} parent=1 // pred_check_branch
      %37 = sbr.rel (0) target = $region29
    $region28: #{tpu_custom_call.1} parent=1 // pred_region
      _
    $region29: #{tpu_custom_call.1} parent=1 // pred_fallthru
      _
    // Predicated region
    $region30: #{tpu_custom_call.1} parent=1 // pred_check
      _
    $region31: #{tpu_custom_call.1} parent=1 // pred_check_branch
      %39 = sbr.rel (0) target = $region33
    $region32: #{tpu_custom_call.1} parent=1 // pred_region
      %41 = dma.done [#allocation4], 16384
    $region33: #{tpu_custom_call.1} parent=1 // pred_fallthru
      _
    %v42 = vld [vmem:[#allocation3] sm:$0xff]
    %v43 = vld [vmem:[#allocation3 + $0x8] sm:$0xff]
    %v44 = vld [vmem:[#allocation3 + $0x10] sm:$0xff]
    %v45 = vld [vmem:[#allocation3 + $0x18] sm:$0xff]
    %v46 = vld [vmem:[#allocation3 + $0x20] sm:$0xff]
    %v47 = vld [vmem:[#allocation3 + $0x28] sm:$0xff]
    %v48 = vld [vmem:[#allocation3 + $0x30] sm:$0xff]
    %v49 = vld [vmem:[#allocation3 + $0x38] sm:$0xff]
    %v50 = vld [vmem:[#allocation3 + $0x40] sm:$0xff]
    %v51 = vld [vmem:[#allocation3 + $0x48] sm:$0xff]
    %v52 = vld [vmem:[#allocation3 + $0x50] sm:$0xff]
    %v53 = vld [vmem:[#allocation3 + $0x58] sm:$0xff]
    %v54 = vld [vmem:[#allocation3 + $0x60] sm:$0xff]
    %v55 = vld [vmem:[#allocation3 + $0x68] sm:$0xff]
    %v56 = vld [vmem:[#allocation3 + $0x70] sm:$0xff]
    %v57 = vld [vmem:[#allocation3 + $0x78] sm:$0xff]
    %v58 = vld [vmem:[#allocation3 + $0x80] sm:$0xff]
    %v59 = vld [vmem:[#allocation3 + $0x88] sm:$0xff]
    %v60 = vld [vmem:[#allocation3 + $0x90] sm:$0xff]
    %v61 = vld [vmem:[#allocation3 + $0x98] sm:$0xff]
    %v62 = vld [vmem:[#allocation3 + $0xa0] sm:$0xff]
    %v63 = vld [vmem:[#allocation3 + $0xa8] sm:$0xff]
    %v64 = vld [vmem:[#allocation3 + $0xb0] sm:$0xff]
    %v65 = vld [vmem:[#allocation3 + $0xb8] sm:$0xff]
    %v66 = vld [vmem:[#allocation3 + $0xc0] sm:$0xff]
    %v67 = vld [vmem:[#allocation3 + $0xc8] sm:$0xff]
    %v68 = vld [vmem:[#allocation3 + $0xd0] sm:$0xff]
    %v69 = vld [vmem:[#allocation3 + $0xd8] sm:$0xff]
    %v70 = vld [vmem:[#allocation3 + $0xe0] sm:$0xff]
    %v71 = vld [vmem:[#allocation3 + $0xe8] sm:$0xff]
    %v72 = vld [vmem:[#allocation3 + $0xf0] sm:$0xff]
    %v73 = vld [vmem:[#allocation3 + $0xf8] sm:$0xff]
    %v74 = vld [vmem:[#allocation3 + $0x100] sm:$0xff]
    %v75 = vld [vmem:[#allocation3 + $0x108] sm:$0xff]
    %v76 = vld [vmem:[#allocation3 + $0x110] sm:$0xff]
    %v77 = vld [vmem:[#allocation3 + $0x118] sm:$0xff]
    %v78 = vld [vmem:[#allocation3 + $0x120] sm:$0xff]
    %v79 = vld [vmem:[#allocation3 + $0x128] sm:$0xff]
    %v80 = vld [vmem:[#allocation3 + $0x130] sm:$0xff]
    %v81 = vld [vmem:[#allocation3 + $0x138] sm:$0xff]
    %v82 = vld [vmem:[#allocation3 + $0x140] sm:$0xff]
    %v83 = vld [vmem:[#allocation3 + $0x148] sm:$0xff]
    %v84 = vld [vmem:[#allocation3 + $0x150] sm:$0xff]
    %v85 = vld [vmem:[#allocation3 + $0x158] sm:$0xff]
    %v86 = vld [vmem:[#allocation3 + $0x160] sm:$0xff]
    %v87 = vld [vmem:[#allocation3 + $0x168] sm:$0xff]
    %v88 = vld [vmem:[#allocation3 + $0x170] sm:$0xff]
    %v89 = vld [vmem:[#allocation3 + $0x178] sm:$0xff]
    %v90 = vld [vmem:[#allocation3 + $0x180] sm:$0xff]
    %v91 = vld [vmem:[#allocation3 + $0x188] sm:$0xff]
    %v92 = vld [vmem:[#allocation3 + $0x190] sm:$0xff]
    %v93 = vld [vmem:[#allocation3 + $0x198] sm:$0xff]
    %v94 = vld [vmem:[#allocation3 + $0x1a0] sm:$0xff]
    %v95 = vld [vmem:[#allocation3 + $0x1a8] sm:$0xff]
    %v96 = vld [vmem:[#allocation3 + $0x1b0] sm:$0xff]
    %v97 = vld [vmem:[#allocation3 + $0x1b8] sm:$0xff]
    %v98 = vld [vmem:[#allocation3 + $0x1c0] sm:$0xff]
    %v99 = vld [vmem:[#allocation3 + $0x1c8] sm:$0xff]
    %v100 = vld [vmem:[#allocation3 + $0x1d0] sm:$0xff]
    %v101 = vld [vmem:[#allocation3 + $0x1d8] sm:$0xff]
    %v102 = vld [vmem:[#allocation3 + $0x1e0] sm:$0xff]
    %v103 = vld [vmem:[#allocation3 + $0x1e8] sm:$0xff]
    %v104 = vld [vmem:[#allocation3 + $0x1f0] sm:$0xff]
    %v105 = vld [vmem:[#allocation3 + $0x1f8] sm:$0xff]
    %v106 = vld [vmem:[#allocation3 + $0x200] sm:$0xff]
    %v107 = vld [vmem:[#allocation3 + $0x208] sm:$0xff]
    %v108 = vld [vmem:[#allocation3 + $0x210] sm:$0xff]
    %v109 = vld [vmem:[#allocation3 + $0x218] sm:$0xff]
    %v110 = vld [vmem:[#allocation3 + $0x220] sm:$0xff]
    %v111 = vld [vmem:[#allocation3 + $0x228] sm:$0xff]
    %v112 = vld [vmem:[#allocation3 + $0x230] sm:$0xff]
    %v113 = vld [vmem:[#allocation3 + $0x238] sm:$0xff]
    %v114 = vld [vmem:[#allocation3 + $0x240] sm:$0xff]
    %v115 = vld [vmem:[#allocation3 + $0x248] sm:$0xff]
    %v116 = vld [vmem:[#allocation3 + $0x250] sm:$0xff]
    %v117 = vld [vmem:[#allocation3 + $0x258] sm:$0xff]
    %v118 = vld [vmem:[#allocation3 + $0x260] sm:$0xff]
    %v119 = vld [vmem:[#allocation3 + $0x268] sm:$0xff]
    %v120 = vld [vmem:[#allocation3 + $0x270] sm:$0xff]
    %v121 = vld [vmem:[#allocation3 + $0x278] sm:$0xff]
    %v122 = vld [vmem:[#allocation3 + $0x280] sm:$0xff]
    %v123 = vld [vmem:[#allocation3 + $0x288] sm:$0xff]
    %v124 = vld [vmem:[#allocation3 + $0x290] sm:$0xff]
    %v125 = vld [vmem:[#allocation3 + $0x298] sm:$0xff]
    %v126 = vld [vmem:[#allocation3 + $0x2a0] sm:$0xff]
    %v127 = vld [vmem:[#allocation3 + $0x2a8] sm:$0xff]
    %v128 = vld [vmem:[#allocation3 + $0x2b0] sm:$0xff]
    %v129 = vld [vmem:[#allocation3 + $0x2b8] sm:$0xff]
    %v130 = vld [vmem:[#allocation3 + $0x2c0] sm:$0xff]
    %v131 = vld [vmem:[#allocation3 + $0x2c8] sm:$0xff]
    %v132 = vld [vmem:[#allocation3 + $0x2d0] sm:$0xff]
    %v133 = vld [vmem:[#allocation3 + $0x2d8] sm:$0xff]
    %v134 = vld [vmem:[#allocation3 + $0x2e0] sm:$0xff]
    %v135 = vld [vmem:[#allocation3 + $0x2e8] sm:$0xff]
    %v136 = vld [vmem:[#allocation3 + $0x2f0] sm:$0xff]
    %v137 = vld [vmem:[#allocation3 + $0x2f8] sm:$0xff]
    %v138 = vld [vmem:[#allocation3 + $0x300] sm:$0xff]
    %v139 = vld [vmem:[#allocation3 + $0x308] sm:$0xff]
    %v140 = vld [vmem:[#allocation3 + $0x310] sm:$0xff]
    %v141 = vld [vmem:[#allocation3 + $0x318] sm:$0xff]
    %v142 = vld [vmem:[#allocation3 + $0x320] sm:$0xff]
    %v143 = vld [vmem:[#allocation3 + $0x328] sm:$0xff]
    %v144 = vld [vmem:[#allocation3 + $0x330] sm:$0xff]
    %v145 = vld [vmem:[#allocation3 + $0x338] sm:$0xff]
    %v146 = vld [vmem:[#allocation3 + $0x340] sm:$0xff]
    %v147 = vld [vmem:[#allocation3 + $0x348] sm:$0xff]
    %v148 = vld [vmem:[#allocation3 + $0x350] sm:$0xff]
    %v149 = vld [vmem:[#allocation3 + $0x358] sm:$0xff]
    %v150 = vld [vmem:[#allocation3 + $0x360] sm:$0xff]
    %v151 = vld [vmem:[#allocation3 + $0x368] sm:$0xff]
    %v152 = vld [vmem:[#allocation3 + $0x370] sm:$0xff]
    %v153 = vld [vmem:[#allocation3 + $0x378] sm:$0xff]
    %v154 = vld [vmem:[#allocation3 + $0x380] sm:$0xff]
    %v155 = vld [vmem:[#allocation3 + $0x388] sm:$0xff]
    %v156 = vld [vmem:[#allocation3 + $0x390] sm:$0xff]
    %v157 = vld [vmem:[#allocation3 + $0x398] sm:$0xff]
    %v158 = vld [vmem:[#allocation3 + $0x3a0] sm:$0xff]
    %v159 = vld [vmem:[#allocation3 + $0x3a8] sm:$0xff]
    %v160 = vld [vmem:[#allocation3 + $0x3b0] sm:$0xff]
    %v161 = vld [vmem:[#allocation3 + $0x3b8] sm:$0xff]
    %v162 = vld [vmem:[#allocation3 + $0x3c0] sm:$0xff]
    %v163 = vld [vmem:[#allocation3 + $0x3c8] sm:$0xff]
    %v164 = vld [vmem:[#allocation3 + $0x3d0] sm:$0xff]
    %v165 = vld [vmem:[#allocation3 + $0x3d8] sm:$0xff]
    %v166 = vld [vmem:[#allocation3 + $0x3e0] sm:$0xff]
    %v167 = vld [vmem:[#allocation3 + $0x3e8] sm:$0xff]
    %v168 = vld [vmem:[#allocation3 + $0x3f0] sm:$0xff]
    %v169 = vld [vmem:[#allocation3 + $0x3f8] sm:$0xff]
    %v170 = vld [vmem:[%s4] sm:$0xf]
    %v171 = vld [vmem:[%s0] sm:$0xff]
    %172 = vst [vmem:[#allocation2] sm:$0xff] %v171
    %173 = vst [vmem:[#allocation2 + $0x8] sm:$0xff] 0.0
    %v174 = vld [vmem:[#allocation2] sm:$0xff]
    %v175 = vld [vmem:[#allocation2 + $0x8] sm:$0xff]
    %v177 = vperm.slane %v170, 0
    %v178 = vperm.slane %v170, 1
    %v179 = vperm.slane %v170, 2
    %v180 = vperm.slane %v170, 3
    %185 = vmatpush.msra.mxu0 %v102
    %186 = vmatpush.msra.mxu0 %v98
    %187 = vmatpush.msra.mxu0 %v94
    %188 = vmatpush.msra.mxu0 %v90
    %189 = vmatpush.msra.mxu0 %v86
    %190 = vmatpush.msra.mxu0 %v82
    %191 = vmatpush.msra.mxu0 %v78
    %192 = vmatpush.msra.mxu0 %v74
    %193 = vmatpush.msra.mxu0 %v70
    %194 = vmatpush.msra.mxu0 %v66
    %195 = vmatpush.msra.mxu0 %v62
    %196 = vmatpush.msra.mxu0 %v58
    %197 = vmatpush.msra.mxu0 %v54
    %198 = vmatpush.msra.mxu0 %v50
    %199 = vmatpush.msra.mxu0 %v46
    %200 = vmatpush.msra.mxu0 %v42
    %201 = vmatmul.f32.gmra.mxu0 %v174
    %v202 = vpop.f32.mrf.mxu0
    %v203 = vadd.f32 %v177, %v202
    %204 = vdwg.mxu0
    %205 = vmatpush.msra.mxu0 %v166
    %206 = vmatpush.msra.mxu0 %v162
    %207 = vmatpush.msra.mxu0 %v158
    %208 = vmatpush.msra.mxu0 %v154
    %209 = vmatpush.msra.mxu0 %v150
    %210 = vmatpush.msra.mxu0 %v146
    %211 = vmatpush.msra.mxu0 %v142
    %212 = vmatpush.msra.mxu0 %v138
    %213 = vmatpush.msra.mxu0 %v134
    %214 = vmatpush.msra.mxu0 %v130
    %215 = vmatpush.msra.mxu0 %v126
    %216 = vmatpush.msra.mxu0 %v122
    %217 = vmatpush.msra.mxu0 %v118
    %218 = vmatpush.msra.mxu0 %v114
    %219 = vmatpush.msra.mxu0 %v110
    %220 = vmatpush.msra.mxu0 %v106
    %221 = vmatmul.f32.gmra.mxu0 %v175
    %v222 = vpop.f32.mrf.mxu0
    %v223 = vadd.f32 %v203, %v222
    %224 = vdwg.mxu0
    %225 = vmatpush.msra.mxu0 %v103
    %226 = vmatpush.msra.mxu0 %v99
    %227 = vmatpush.msra.mxu0 %v95
    %228 = vmatpush.msra.mxu0 %v91
    %229 = vmatpush.msra.mxu0 %v87
    %230 = vmatpush.msra.mxu0 %v83
    %231 = vmatpush.msra.mxu0 %v79
    %232 = vmatpush.msra.mxu0 %v75
    %233 = vmatpush.msra.mxu0 %v71
    %234 = vmatpush.msra.mxu0 %v67
    %235 = vmatpush.msra.mxu0 %v63
    %236 = vmatpush.msra.mxu0 %v59
    %237 = vmatpush.msra.mxu0 %v55
    %238 = vmatpush.msra.mxu0 %v51
    %239 = vmatpush.msra.mxu0 %v47
    %240 = vmatpush.msra.mxu0 %v43
    %241 = vmatmul.f32.gmra.mxu0 %v174
    %v242 = vpop.f32.mrf.mxu0
    %v243 = vadd.f32 %v178, %v242
    %244 = vdwg.mxu0
    %245 = vmatpush.msra.mxu0 %v167
    %246 = vmatpush.msra.mxu0 %v163
    %247 = vmatpush.msra.mxu0 %v159
    %248 = vmatpush.msra.mxu0 %v155
    %249 = vmatpush.msra.mxu0 %v151
    %250 = vmatpush.msra.mxu0 %v147
    %251 = vmatpush.msra.mxu0 %v143
    %252 = vmatpush.msra.mxu0 %v139
    %253 = vmatpush.msra.mxu0 %v135
    %254 = vmatpush.msra.mxu0 %v131
    %255 = vmatpush.msra.mxu0 %v127
    %256 = vmatpush.msra.mxu0 %v123
    %257 = vmatpush.msra.mxu0 %v119
    %258 = vmatpush.msra.mxu0 %v115
    %259 = vmatpush.msra.mxu0 %v111
    %260 = vmatpush.msra.mxu0 %v107
    %261 = vmatmul.f32.gmra.mxu0 %v175
    %v262 = vpop.f32.mrf.mxu0
    %v263 = vadd.f32 %v243, %v262
    %264 = vdwg.mxu0
    %265 = vmatpush.msra.mxu0 %v104
    %266 = vmatpush.msra.mxu0 %v100
    %267 = vmatpush.msra.mxu0 %v96
    %268 = vmatpush.msra.mxu0 %v92
    %269 = vmatpush.msra.mxu0 %v88
    %270 = vmatpush.msra.mxu0 %v84
    %271 = vmatpush.msra.mxu0 %v80
    %272 = vmatpush.msra.mxu0 %v76
    %273 = vmatpush.msra.mxu0 %v72
    %274 = vmatpush.msra.mxu0 %v68
    %275 = vmatpush.msra.mxu0 %v64
    %276 = vmatpush.msra.mxu0 %v60
    %277 = vmatpush.msra.mxu0 %v56
    %278 = vmatpush.msra.mxu0 %v52
    %279 = vmatpush.msra.mxu0 %v48
    %280 = vmatpush.msra.mxu0 %v44
    %281 = vmatmul.f32.gmra.mxu0 %v174
    %v282 = vpop.f32.mrf.mxu0
    %v283 = vadd.f32 %v179, %v282
    %284 = vdwg.mxu0
    %285 = vmatpush.msra.mxu0 %v168
    %286 = vmatpush.msra.mxu0 %v164
    %287 = vmatpush.msra.mxu0 %v160
    %288 = vmatpush.msra.mxu0 %v156
    %289 = vmatpush.msra.mxu0 %v152
    %290 = vmatpush.msra.mxu0 %v148
    %291 = vmatpush.msra.mxu0 %v144
    %292 = vmatpush.msra.mxu0 %v140
    %293 = vmatpush.msra.mxu0 %v136
    %294 = vmatpush.msra.mxu0 %v132
    %295 = vmatpush.msra.mxu0 %v128
    %296 = vmatpush.msra.mxu0 %v124
    %297 = vmatpush.msra.mxu0 %v120
    %298 = vmatpush.msra.mxu0 %v116
    %299 = vmatpush.msra.mxu0 %v112
    %300 = vmatpush.msra.mxu0 %v108
    %301 = vmatmul.f32.gmra.mxu0 %v175
    %v302 = vpop.f32.mrf.mxu0
    %v303 = vadd.f32 %v283, %v302
    %304 = vdwg.mxu0
    %305 = vmatpush.msra.mxu0 %v105
    %306 = vmatpush.msra.mxu0 %v101
    %307 = vmatpush.msra.mxu0 %v97
    %308 = vmatpush.msra.mxu0 %v93
    %309 = vmatpush.msra.mxu0 %v89
    %310 = vmatpush.msra.mxu0 %v85
    %311 = vmatpush.msra.mxu0 %v81
    %312 = vmatpush.msra.mxu0 %v77
    %313 = vmatpush.msra.mxu0 %v73
    %314 = vmatpush.msra.mxu0 %v69
    %315 = vmatpush.msra.mxu0 %v65
    %316 = vmatpush.msra.mxu0 %v61
    %317 = vmatpush.msra.mxu0 %v57
    %318 = vmatpush.msra.mxu0 %v53
    %319 = vmatpush.msra.mxu0 %v49
    %320 = vmatpush.msra.mxu0 %v45
    %321 = vmatmul.f32.gmra.mxu0 %v174
    %v322 = vpop.f32.mrf.mxu0
    %v323 = vadd.f32 %v180, %v322
    %324 = vdwg.mxu0
    %325 = vmatpush.msra.mxu0 %v169
    %326 = vmatpush.msra.mxu0 %v165
    %327 = vmatpush.msra.mxu0 %v161
    %328 = vmatpush.msra.mxu0 %v157
    %329 = vmatpush.msra.mxu0 %v153
    %330 = vmatpush.msra.mxu0 %v149
    %331 = vmatpush.msra.mxu0 %v145
    %332 = vmatpush.msra.mxu0 %v141
    %333 = vmatpush.msra.mxu0 %v137
    %334 = vmatpush.msra.mxu0 %v133
    %335 = vmatpush.msra.mxu0 %v129
    %336 = vmatpush.msra.mxu0 %v125
    %337 = vmatpush.msra.mxu0 %v121
    %338 = vmatpush.msra.mxu0 %v117
    %339 = vmatpush.msra.mxu0 %v113
    %340 = vmatpush.msra.mxu0 %v109
    %341 = vmatmul.f32.gmra.mxu0 %v175
    %v342 = vpop.f32.mrf.mxu0
    %v343 = vadd.f32 %v323, %v342
    %344 = vdwg.mxu0
    %v345 = vxor.u32 %v223, 2147483648
    %v346 = vmul.f32 %v345, 1.442695
    %v347 = vpow.pop %v346
    %v348 = vadd.f32 %v347, 1.0
    %v349 = vrcp.pop %v348
    %v350 = vmul.f32 %v348, %v349
    %v351 = vsub.f32 1.0, %v350
    %v352 = vmul.f32 %v349, %v351
    %v353 = vadd.f32 %v349, %v352
    %vm354 = vweird.f32 %v348
    %vm355 = vweird.f32 %v349
    %vm356 = vmor %vm354, %vm355
    %v357 = vsel %vm356, %v349, %v353
    %v358 = vand.u32 2147483647, %v348
    %vm359 = vcmp.eq.f32.partialorder %v358, 8.507059e+37
    %v360 = vand.u32 %v348, 2147483648
    %v361 = vor.u32 1.1754944e-38, %v360
    %v362 = vsel %vm359, %v361, %v357
    %v363 = vmul.f32 1.0, %v362
    %v364 = vxor.u32 %v263, 2147483648
    %v365 = vmul.f32 %v364, 1.442695
    %v366 = vpow.pop %v365
    %v367 = vadd.f32 %v366, 1.0
    %v368 = vrcp.pop %v367
    %v369 = vmul.f32 %v367, %v368
    %v370 = vsub.f32 1.0, %v369
    %v371 = vmul.f32 %v368, %v370
    %v372 = vadd.f32 %v368, %v371
    %vm373 = vweird.f32 %v367
    %vm374 = vweird.f32 %v368
    %vm375 = vmor %vm373, %vm374
    %v376 = vsel %vm375, %v368, %v372
    %v377 = vand.u32 2147483647, %v367
    %vm378 = vcmp.eq.f32.partialorder %v377, 8.507059e+37
    %v379 = vand.u32 %v367, 2147483648
    %v380 = vor.u32 1.1754944e-38, %v379
    %v381 = vsel %vm378, %v380, %v376
    %v382 = vmul.f32 1.0, %v381
    %v383 = vtanh.pop %v303
    %v384 = vxor.u32 %v343, 2147483648
    %v385 = vmul.f32 %v384, 1.442695
    %v386 = vpow.pop %v385
    %v387 = vadd.f32 %v386, 1.0
    %v388 = vrcp.pop %v387
    %v389 = vmul.f32 %v387, %v388
    %v390 = vsub.f32 1.0, %v389
    %v391 = vmul.f32 %v388, %v390
    %v392 = vadd.f32 %v388, %v391
    %vm393 = vweird.f32 %v387
    %vm394 = vweird.f32 %v388
    %vm395 = vmor %vm393, %vm394
    %v396 = vsel %vm395, %v388, %v392
    %v397 = vand.u32 2147483647, %v387
    %vm398 = vcmp.eq.f32.partialorder %v397, 8.507059e+37
    %v399 = vand.u32 %v387, 2147483648
    %v400 = vor.u32 1.1754944e-38, %v399
    %v401 = vsel %vm398, %v400, %v396
    %v402 = vmul.f32 1.0, %v401
    %v403 = vmul.f32 %v382, 0.0
    %v404 = vmul.f32 %v363, %v383
    %v405 = vadd.f32 %v403, %v404
    %v406 = vtanh.pop %v405
    %v407 = vmul.f32 %v402, %v406
    %v408 = vld [vmem:[%s1] sm:$0xff]
    %vm409 = vcmp.gt.s32.totalorder %v408, 0
    %v410 = vsel %vm409, 1, 0
    %411 = vset.pattern.permute.xlu0 0
    %412 = vperm.xlu0 %411, %v410
    %v413 = vpop.permute.xlu0 %412
    %vm414 = vcmp.eq.s32.totalorder %v413, 1
    %v415 = vsel %vm414, %v407, 0.0
    %v416 = vsel %vm414, %v405, 0.0
    %v417 = vadd.f32 %v415, 0.0
    %s418 = scalar_lea.vmem %s0, 8
    %v419 = vld [vmem:[%s418] sm:$0xff]
    %420 = vst [vmem:[#allocation2] sm:$0xff] %v419
    %421 = vst [vmem:[#allocation2 + $0x8] sm:$0xff] %v415
    %v422 = vld [vmem:[#allocation2] sm:$0xff]
    %v423 = vld [vmem:[#allocation2 + $0x8] sm:$0xff]
    %424 = vmatpush.msra.mxu0 %v102
    %425 = vmatpush.msra.mxu0 %v98
    %426 = vmatpush.msra.mxu0 %v94
    %427 = vmatpush.msra.mxu0 %v90
    %428 = vmatpush.msra.mxu0 %v86
    %429 = vmatpush.msra.mxu0 %v82
    %430 = vmatpush.msra.mxu0 %v78
    %431 = vmatpush.msra.mxu0 %v74
    %432 = vmatpush.msra.mxu0 %v70
    %433 = vmatpush.msra.mxu0 %v66
    %434 = vmatpush.msra.mxu0 %v62
    %435 = vmatpush.msra.mxu0 %v58
    %436 = vmatpush.msra.mxu0 %v54
    %437 = vmatpush.msra.mxu0 %v50
    %438 = vmatpush.msra.mxu0 %v46
    %439 = vmatpush.msra.mxu0 %v42
    %440 = vmatmul.f32.gmra.mxu0 %v422
    %v441 = vpop.f32.mrf.mxu0
    %v442 = vadd.f32 %v177, %v441
    %443 = vdwg.mxu0
    %444 = vmatpush.msra.mxu0 %v166
    %445 = vmatpush.msra.mxu0 %v162
    %446 = vmatpush.msra.mxu0 %v158
    %447 = vmatpush.msra.mxu0 %v154
    %448 = vmatpush.msra.mxu0 %v150
    %449 = vmatpush.msra.mxu0 %v146
    %450 = vmatpush.msra.mxu0 %v142
    %451 = vmatpush.msra.mxu0 %v138
    %452 = vmatpush.msra.mxu0 %v134
    %453 = vmatpush.msra.mxu0 %v130
    %454 = vmatpush.msra.mxu0 %v126
    %455 = vmatpush.msra.mxu0 %v122
    %456 = vmatpush.msra.mxu0 %v118
    %457 = vmatpush.msra.mxu0 %v114
    %458 = vmatpush.msra.mxu0 %v110
    %459 = vmatpush.msra.mxu0 %v106
    %460 = vmatmul.f32.gmra.mxu0 %v423
    %v461 = vpop.f32.mrf.mxu0
    %v462 = vadd.f32 %v442, %v461
    %463 = vdwg.mxu0
    %464 = vmatpush.msra.mxu0 %v103
    %465 = vmatpush.msra.mxu0 %v99
    %466 = vmatpush.msra.mxu0 %v95
    %467 = vmatpush.msra.mxu0 %v91
    %468 = vmatpush.msra.mxu0 %v87
    %469 = vmatpush.msra.mxu0 %v83
    %470 = vmatpush.msra.mxu0 %v79
    %471 = vmatpush.msra.mxu0 %v75
    %472 = vmatpush.msra.mxu0 %v71
    %473 = vmatpush.msra.mxu0 %v67
    %474 = vmatpush.msra.mxu0 %v63
    %475 = vmatpush.msra.mxu0 %v59
    %476 = vmatpush.msra.mxu0 %v55
    %477 = vmatpush.msra.mxu0 %v51
    %478 = vmatpush.msra.mxu0 %v47
    %479 = vmatpush.msra.mxu0 %v43
    %480 = vmatmul.f32.gmra.mxu0 %v422
    %v481 = vpop.f32.mrf.mxu0
    %v482 = vadd.f32 %v178, %v481
    %483 = vdwg.mxu0
    %484 = vmatpush.msra.mxu0 %v167
    %485 = vmatpush.msra.mxu0 %v163
    %486 = vmatpush.msra.mxu0 %v159
    %487 = vmatpush.msra.mxu0 %v155
    %488 = vmatpush.msra.mxu0 %v151
    %489 = vmatpush.msra.mxu0 %v147
    %490 = vmatpush.msra.mxu0 %v143
    %491 = vmatpush.msra.mxu0 %v139
    %492 = vmatpush.msra.mxu0 %v135
    %493 = vmatpush.msra.mxu0 %v131
    %494 = vmatpush.msra.mxu0 %v127
    %495 = vmatpush.msra.mxu0 %v123
    %496 = vmatpush.msra.mxu0 %v119
    %497 = vmatpush.msra.mxu0 %v115
    %498 = vmatpush.msra.mxu0 %v111
    %499 = vmatpush.msra.mxu0 %v107
    %500 = vmatmul.f32.gmra.mxu0 %v423
    %v501 = vpop.f32.mrf.mxu0
    %v502 = vadd.f32 %v482, %v501
    %503 = vdwg.mxu0
    %504 = vmatpush.msra.mxu0 %v104
    %505 = vmatpush.msra.mxu0 %v100
    %506 = vmatpush.msra.mxu0 %v96
    %507 = vmatpush.msra.mxu0 %v92
    %508 = vmatpush.msra.mxu0 %v88
    %509 = vmatpush.msra.mxu0 %v84
    %510 = vmatpush.msra.mxu0 %v80
    %511 = vmatpush.msra.mxu0 %v76
    %512 = vmatpush.msra.mxu0 %v72
    %513 = vmatpush.msra.mxu0 %v68
    %514 = vmatpush.msra.mxu0 %v64
    %515 = vmatpush.msra.mxu0 %v60
    %516 = vmatpush.msra.mxu0 %v56
    %517 = vmatpush.msra.mxu0 %v52
    %518 = vmatpush.msra.mxu0 %v48
    %519 = vmatpush.msra.mxu0 %v44
    %520 = vmatmul.f32.gmra.mxu0 %v422
    %v521 = vpop.f32.mrf.mxu0
    %v522 = vadd.f32 %v179, %v521
    %523 = vdwg.mxu0
    %524 = vmatpush.msra.mxu0 %v168
    %525 = vmatpush.msra.mxu0 %v164
    %526 = vmatpush.msra.mxu0 %v160
    %527 = vmatpush.msra.mxu0 %v156
    %528 = vmatpush.msra.mxu0 %v152
    %529 = vmatpush.msra.mxu0 %v148
    %530 = vmatpush.msra.mxu0 %v144
    %531 = vmatpush.msra.mxu0 %v140
    %532 = vmatpush.msra.mxu0 %v136
    %533 = vmatpush.msra.mxu0 %v132
    %534 = vmatpush.msra.mxu0 %v128
    %535 = vmatpush.msra.mxu0 %v124
    %536 = vmatpush.msra.mxu0 %v120
    %537 = vmatpush.msra.mxu0 %v116
    %538 = vmatpush.msra.mxu0 %v112
    %539 = vmatpush.msra.mxu0 %v108
    %540 = vmatmul.f32.gmra.mxu0 %v423
    %v541 = vpop.f32.mrf.mxu0
    %v542 = vadd.f32 %v522, %v541
    %543 = vdwg.mxu0
    %544 = vmatpush.msra.mxu0 %v105
    %545 = vmatpush.msra.mxu0 %v101
    %546 = vmatpush.msra.mxu0 %v97
    %547 = vmatpush.msra.mxu0 %v93
    %548 = vmatpush.msra.mxu0 %v89
    %549 = vmatpush.msra.mxu0 %v85
    %550 = vmatpush.msra.mxu0 %v81
    %551 = vmatpush.msra.mxu0 %v77
    %552 = vmatpush.msra.mxu0 %v73
    %553 = vmatpush.msra.mxu0 %v69
    %554 = vmatpush.msra.mxu0 %v65
    %555 = vmatpush.msra.mxu0 %v61
    %556 = vmatpush.msra.mxu0 %v57
    %557 = vmatpush.msra.mxu0 %v53
    %558 = vmatpush.msra.mxu0 %v49
    %559 = vmatpush.msra.mxu0 %v45
    %560 = vmatmul.f32.gmra.mxu0 %v422
    %v561 = vpop.f32.mrf.mxu0
    %v562 = vadd.f32 %v180, %v561
    %563 = vdwg.mxu0
    %564 = vmatpush.msra.mxu0 %v169
    %565 = vmatpush.msra.mxu0 %v165
    %566 = vmatpush.msra.mxu0 %v161
    %567 = vmatpush.msra.mxu0 %v157
    %568 = vmatpush.msra.mxu0 %v153
    %569 = vmatpush.msra.mxu0 %v149
    %570 = vmatpush.msra.mxu0 %v145
    %571 = vmatpush.msra.mxu0 %v141
    %572 = vmatpush.msra.mxu0 %v137
    %573 = vmatpush.msra.mxu0 %v133
    %574 = vmatpush.msra.mxu0 %v129
    %575 = vmatpush.msra.mxu0 %v125
    %576 = vmatpush.msra.mxu0 %v121
    %577 = vmatpush.msra.mxu0 %v117
    %578 = vmatpush.msra.mxu0 %v113
    %579 = vmatpush.msra.mxu0 %v109
    %580 = vmatmul.f32.gmra.mxu0 %v423
    %v581 = vpop.f32.mrf.mxu0
    %v582 = vadd.f32 %v562, %v581
    %583 = vdwg.mxu0
    %v584 = vxor.u32 %v462, 2147483648
    %v585 = vmul.f32 %v584, 1.442695
    %v586 = vpow.pop %v585
    %v587 = vadd.f32 %v586, 1.0
    %v588 = vrcp.pop %v587
    %v589 = vmul.f32 %v587, %v588
    %v590 = vsub.f32 1.0, %v589
    %v591 = vmul.f32 %v588, %v590
    %v592 = vadd.f32 %v588, %v591
    %vm593 = vweird.f32 %v587
    %vm594 = vweird.f32 %v588
    %vm595 = vmor %vm593, %vm594
    %v596 = vsel %vm595, %v588, %v592
    %v597 = vand.u32 2147483647, %v587
    %vm598 = vcmp.eq.f32.partialorder %v597, 8.507059e+37
    %v599 = vand.u32 %v587, 2147483648
    %v600 = vor.u32 1.1754944e-38, %v599
    %v601 = vsel %vm598, %v600, %v596
    %v602 = vmul.f32 1.0, %v601
    %v603 = vxor.u32 %v502, 2147483648
    %v604 = vmul.f32 %v603, 1.442695
    %v605 = vpow.pop %v604
    %v606 = vadd.f32 %v605, 1.0
    %v607 = vrcp.pop %v606
    %v608 = vmul.f32 %v606, %v607
    %v609 = vsub.f32 1.0, %v608
    %v610 = vmul.f32 %v607, %v609
    %v611 = vadd.f32 %v607, %v610
    %vm612 = vweird.f32 %v606
    %vm613 = vweird.f32 %v607
    %vm614 = vmor %vm612, %vm613
    %v615 = vsel %vm614, %v607, %v611
    %v616 = vand.u32 2147483647, %v606
    %vm617 = vcmp.eq.f32.partialorder %v616, 8.507059e+37
    %v618 = vand.u32 %v606, 2147483648
    %v619 = vor.u32 1.1754944e-38, %v618
    %v620 = vsel %vm617, %v619, %v615
    %v621 = vmul.f32 1.0, %v620
    %v622 = vtanh.pop %v542
    %v623 = vxor.u32 %v582, 2147483648
    %v624 = vmul.f32 %v623, 1.442695
    %v625 = vpow.pop %v624
    %v626 = vadd.f32 %v625, 1.0
    %v627 = vrcp.pop %v626
    %v628 = vmul.f32 %v626, %v627
    %v629 = vsub.f32 1.0, %v628
    %v630 = vmul.f32 %v627, %v629
    %v631 = vadd.f32 %v627, %v630
    %vm632 = vweird.f32 %v626
    %vm633 = vweird.f32 %v627
    %vm634 = vmor %vm632, %vm633
    %v635 = vsel %vm634, %v627, %v631
    %v636 = vand.u32 2147483647, %v626
    %vm637 = vcmp.eq.f32.partialorder %v636, 8.507059e+37
    %v638 = vand.u32 %v626, 2147483648
    %v639 = vor.u32 1.1754944e-38, %v638
    %v640 = vsel %vm637, %v639, %v635
    %v641 = vmul.f32 1.0, %v640
    %v642 = vmul.f32 %v621, %v416
    %v643 = vmul.f32 %v602, %v622
    %v644 = vadd.f32 %v642, %v643
    %v645 = vtanh.pop %v644
    %v646 = vmul.f32 %v641, %v645
    %v647 = vld [vmem:[%s1] sm:$0xff]
    %vm648 = vcmp.gt.s32.totalorder %v647, 1
    %v649 = vsel %vm648, 1, 0
    %650 = vset.pattern.permute.xlu0 0
    %651 = vperm.xlu0 %650, %v649
    %v652 = vpop.permute.xlu0 %651
    %vm653 = vcmp.eq.s32.totalorder %v652, 1
    %v654 = vsel %vm653, %v646, %v415
    %v655 = vsel %vm653, %v644, %v416
    %v656 = vsel %vm653, %v646, 0.0
    %v657 = vadd.f32 %v417, %v656
    %s658 = scalar_lea.vmem %s0, 16
    %v659 = vld [vmem:[%s658] sm:$0xff]
    %660 = vst [vmem:[#allocation2] sm:$0xff] %v659
    %661 = vst [vmem:[#allocation2 + $0x8] sm:$0xff] %v654
    %v662 = vld [vmem:[#allocation2] sm:$0xff]
    %v663 = vld [vmem:[#allocation2 + $0x8] sm:$0xff]
    %664 = vmatpush.msra.mxu0 %v102
    %665 = vmatpush.msra.mxu0 %v98
    %666 = vmatpush.msra.mxu0 %v94
    %667 = vmatpush.msra.mxu0 %v90
    %668 = vmatpush.msra.mxu0 %v86
    %669 = vmatpush.msra.mxu0 %v82
    %670 = vmatpush.msra.mxu0 %v78
    %671 = vmatpush.msra.mxu0 %v74
    %672 = vmatpush.msra.mxu0 %v70
    %673 = vmatpush.msra.mxu0 %v66
    %674 = vmatpush.msra.mxu0 %v62
    %675 = vmatpush.msra.mxu0 %v58
    %676 = vmatpush.msra.mxu0 %v54
    %677 = vmatpush.msra.mxu0 %v50
    %678 = vmatpush.msra.mxu0 %v46
    %679 = vmatpush.msra.mxu0 %v42
    %680 = vmatmul.f32.gmra.mxu0 %v662
    %v681 = vpop.f32.mrf.mxu0
    %v682 = vadd.f32 %v177, %v681
    %683 = vdwg.mxu0
    %684 = vmatpush.msra.mxu0 %v166
    %685 = vmatpush.msra.mxu0 %v162
    %686 = vmatpush.msra.mxu0 %v158
    %687 = vmatpush.msra.mxu0 %v154
    %688 = vmatpush.msra.mxu0 %v150
    %689 = vmatpush.msra.mxu0 %v146
    %690 = vmatpush.msra.mxu0 %v142
    %691 = vmatpush.msra.mxu0 %v138
    %692 = vmatpush.msra.mxu0 %v134
    %693 = vmatpush.msra.mxu0 %v130
    %694 = vmatpush.msra.mxu0 %v126
    %695 = vmatpush.msra.mxu0 %v122
    %696 = vmatpush.msra.mxu0 %v118
    %697 = vmatpush.msra.mxu0 %v114
    %698 = vmatpush.msra.mxu0 %v110
    %699 = vmatpush.msra.mxu0 %v106
    %700 = vmatmul.f32.gmra.mxu0 %v663
    %v701 = vpop.f32.mrf.mxu0
    %v702 = vadd.f32 %v682, %v701
    %703 = vdwg.mxu0
    %704 = vmatpush.msra.mxu0 %v103
    %705 = vmatpush.msra.mxu0 %v99
    %706 = vmatpush.msra.mxu0 %v95
    %707 = vmatpush.msra.mxu0 %v91
    %708 = vmatpush.msra.mxu0 %v87
    %709 = vmatpush.msra.mxu0 %v83
    %710 = vmatpush.msra.mxu0 %v79
    %711 = vmatpush.msra.mxu0 %v75
    %712 = vmatpush.msra.mxu0 %v71
    %713 = vmatpush.msra.mxu0 %v67
    %714 = vmatpush.msra.mxu0 %v63
    %715 = vmatpush.msra.mxu0 %v59
    %716 = vmatpush.msra.mxu0 %v55
    %717 = vmatpush.msra.mxu0 %v51
    %718 = vmatpush.msra.mxu0 %v47
    %719 = vmatpush.msra.mxu0 %v43
    %720 = vmatmul.f32.gmra.mxu0 %v662
    %v721 = vpop.f32.mrf.mxu0
    %v722 = vadd.f32 %v178, %v721
    %723 = vdwg.mxu0
    %724 = vmatpush.msra.mxu0 %v167
    %725 = vmatpush.msra.mxu0 %v163
    %726 = vmatpush.msra.mxu0 %v159
    %727 = vmatpush.msra.mxu0 %v155
    %728 = vmatpush.msra.mxu0 %v151
    %729 = vmatpush.msra.mxu0 %v147
    %730 = vmatpush.msra.mxu0 %v143
    %731 = vmatpush.msra.mxu0 %v139
    %732 = vmatpush.msra.mxu0 %v135
    %733 = vmatpush.msra.mxu0 %v131
    %734 = vmatpush.msra.mxu0 %v127
    %735 = vmatpush.msra.mxu0 %v123
    %736 = vmatpush.msra.mxu0 %v119
    %737 = vmatpush.msra.mxu0 %v115
    %738 = vmatpush.msra.mxu0 %v111
    %739 = vmatpush.msra.mxu0 %v107
    %740 = vmatmul.f32.gmra.mxu0 %v663
    %v741 = vpop.f32.mrf.mxu0
    %v742 = vadd.f32 %v722, %v741
    %743 = vdwg.mxu0
    %744 = vmatpush.msra.mxu0 %v104
    %745 = vmatpush.msra.mxu0 %v100
    %746 = vmatpush.msra.mxu0 %v96
    %747 = vmatpush.msra.mxu0 %v92
    %748 = vmatpush.msra.mxu0 %v88
    %749 = vmatpush.msra.mxu0 %v84
    %750 = vmatpush.msra.mxu0 %v80
    %751 = vmatpush.msra.mxu0 %v76
    %752 = vmatpush.msra.mxu0 %v72
    %753 = vmatpush.msra.mxu0 %v68
    %754 = vmatpush.msra.mxu0 %v64
    %755 = vmatpush.msra.mxu0 %v60
    %756 = vmatpush.msra.mxu0 %v56
    %757 = vmatpush.msra.mxu0 %v52
    %758 = vmatpush.msra.mxu0 %v48
    %759 = vmatpush.msra.mxu0 %v44
    %760 = vmatmul.f32.gmra.mxu0 %v662
    %v761 = vpop.f32.mrf.mxu0
    %v762 = vadd.f32 %v179, %v761
    %763 = vdwg.mxu0
    %764 = vmatpush.msra.mxu0 %v168
    %765 = vmatpush.msra.mxu0 %v164
    %766 = vmatpush.msra.mxu0 %v160
    %767 = vmatpush.msra.mxu0 %v156
    %768 = vmatpush.msra.mxu0 %v152
    %769 = vmatpush.msra.mxu0 %v148
    %770 = vmatpush.msra.mxu0 %v144
    %771 = vmatpush.msra.mxu0 %v140
    %772 = vmatpush.msra.mxu0 %v136
    %773 = vmatpush.msra.mxu0 %v132
    %774 = vmatpush.msra.mxu0 %v128
    %775 = vmatpush.msra.mxu0 %v124
    %776 = vmatpush.msra.mxu0 %v120
    %777 = vmatpush.msra.mxu0 %v116
    %778 = vmatpush.msra.mxu0 %v112
    %779 = vmatpush.msra.mxu0 %v108
    %780 = vmatmul.f32.gmra.mxu0 %v663
    %v781 = vpop.f32.mrf.mxu0
    %v782 = vadd.f32 %v762, %v781
    %783 = vdwg.mxu0
    %784 = vmatpush.msra.mxu0 %v105
    %785 = vmatpush.msra.mxu0 %v101
    %786 = vmatpush.msra.mxu0 %v97
    %787 = vmatpush.msra.mxu0 %v93
    %788 = vmatpush.msra.mxu0 %v89
    %789 = vmatpush.msra.mxu0 %v85
    %790 = vmatpush.msra.mxu0 %v81
    %791 = vmatpush.msra.mxu0 %v77
    %792 = vmatpush.msra.mxu0 %v73
    %793 = vmatpush.msra.mxu0 %v69
    %794 = vmatpush.msra.mxu0 %v65
    %795 = vmatpush.msra.mxu0 %v61
    %796 = vmatpush.msra.mxu0 %v57
    %797 = vmatpush.msra.mxu0 %v53
    %798 = vmatpush.msra.mxu0 %v49
    %799 = vmatpush.msra.mxu0 %v45
    %800 = vmatmul.f32.gmra.mxu0 %v662
    %v801 = vpop.f32.mrf.mxu0
    %v802 = vadd.f32 %v180, %v801
    %803 = vdwg.mxu0
    %804 = vmatpush.msra.mxu0 %v169
    %805 = vmatpush.msra.mxu0 %v165
    %806 = vmatpush.msra.mxu0 %v161
    %807 = vmatpush.msra.mxu0 %v157
    %808 = vmatpush.msra.mxu0 %v153
    %809 = vmatpush.msra.mxu0 %v149
    %810 = vmatpush.msra.mxu0 %v145
    %811 = vmatpush.msra.mxu0 %v141
    %812 = vmatpush.msra.mxu0 %v137
    %813 = vmatpush.msra.mxu0 %v133
    %814 = vmatpush.msra.mxu0 %v129
    %815 = vmatpush.msra.mxu0 %v125
    %816 = vmatpush.msra.mxu0 %v121
    %817 = vmatpush.msra.mxu0 %v117
    %818 = vmatpush.msra.mxu0 %v113
    %819 = vmatpush.msra.mxu0 %v109
    %820 = vmatmul.f32.gmra.mxu0 %v663
    %v821 = vpop.f32.mrf.mxu0
    %v822 = vadd.f32 %v802, %v821
    %823 = vdwg.mxu0
    %v824 = vxor.u32 %v702, 2147483648
    %v825 = vmul.f32 %v824, 1.442695
    %v826 = vpow.pop %v825
    %v827 = vadd.f32 %v826, 1.0
    %v828 = vrcp.pop %v827
    %v829 = vmul.f32 %v827, %v828
    %v830 = vsub.f32 1.0, %v829
    %v831 = vmul.f32 %v828, %v830
    %v832 = vadd.f32 %v828, %v831
    %vm833 = vweird.f32 %v827
    %vm834 = vweird.f32 %v828
    %vm835 = vmor %vm833, %vm834
    %v836 = vsel %vm835, %v828, %v832
    %v837 = vand.u32 2147483647, %v827
    %vm838 = vcmp.eq.f32.partialorder %v837, 8.507059e+37
    %v839 = vand.u32 %v827, 2147483648
    %v840 = vor.u32 1.1754944e-38, %v839
    %v841 = vsel %vm838, %v840, %v836
    %v842 = vmul.f32 1.0, %v841
    %v843 = vxor.u32 %v742, 2147483648
    %v844 = vmul.f32 %v843, 1.442695
    %v845 = vpow.pop %v844
    %v846 = vadd.f32 %v845, 1.0
    %v847 = vrcp.pop %v846
    %v848 = vmul.f32 %v846, %v847
    %v849 = vsub.f32 1.0, %v848
    %v850 = vmul.f32 %v847, %v849
    %v851 = vadd.f32 %v847, %v850
    %vm852 = vweird.f32 %v846
    %vm853 = vweird.f32 %v847
    %vm854 = vmor %vm852, %vm853
    %v855 = vsel %vm854, %v847, %v851
    %v856 = vand.u32 2147483647, %v846
    %vm857 = vcmp.eq.f32.partialorder %v856, 8.507059e+37
    %v858 = vand.u32 %v846, 2147483648
    %v859 = vor.u32 1.1754944e-38, %v858
    %v860 = vsel %vm857, %v859, %v855
    %v861 = vmul.f32 1.0, %v860
    %v862 = vtanh.pop %v782
    %v863 = vxor.u32 %v822, 2147483648
    %v864 = vmul.f32 %v863, 1.442695
    %v865 = vpow.pop %v864
    %v866 = vadd.f32 %v865, 1.0
    %v867 = vrcp.pop %v866
    %v868 = vmul.f32 %v866, %v867
    %v869 = vsub.f32 1.0, %v868
    %v870 = vmul.f32 %v867, %v869
    %v871 = vadd.f32 %v867, %v870
    %vm872 = vweird.f32 %v866
    %vm873 = vweird.f32 %v867
    %vm874 = vmor %vm872, %vm873
    %v875 = vsel %vm874, %v867, %v871
    %v876 = vand.u32 2147483647, %v866
    %vm877 = vcmp.eq.f32.partialorder %v876, 8.507059e+37
    %v878 = vand.u32 %v866, 2147483648
    %v879 = vor.u32 1.1754944e-38, %v878
    %v880 = vsel %vm877, %v879, %v875
    %v881 = vmul.f32 1.0, %v880
    %v882 = vmul.f32 %v861, %v655
    %v883 = vmul.f32 %v842, %v862
    %v884 = vadd.f32 %v882, %v883
    %v885 = vtanh.pop %v884
    %v886 = vmul.f32 %v881, %v885
    %v887 = vld [vmem:[%s1] sm:$0xff]
    %vm888 = vcmp.gt.s32.totalorder %v887, 2
    %v889 = vsel %vm888, 1, 0
    %890 = vset.pattern.permute.xlu0 0
    %891 = vperm.xlu0 %890, %v889
    %v892 = vpop.permute.xlu0 %891
    %vm893 = vcmp.eq.s32.totalorder %v892, 1
    %v894 = vsel %vm893, %v886, %v654
    %v895 = vsel %vm893, %v884, %v655
    %v896 = vsel %vm893, %v886, 0.0
    %v897 = vadd.f32 %v657, %v896
    %s898 = scalar_lea.vmem %s0, 24
    %v899 = vld [vmem:[%s898] sm:$0xff]
    %900 = vst [vmem:[#allocation2] sm:$0xff] %v899
    %901 = vst [vmem:[#allocation2 + $0x8] sm:$0xff] %v894
    %v902 = vld [vmem:[#allocation2] sm:$0xff]
    %v903 = vld [vmem:[#allocation2 + $0x8] sm:$0xff]
    %904 = vmatpush.msra.mxu0 %v102
    %905 = vmatpush.msra.mxu0 %v98
    %906 = vmatpush.msra.mxu0 %v94
    %907 = vmatpush.msra.mxu0 %v90
    %908 = vmatpush.msra.mxu0 %v86
    %909 = vmatpush.msra.mxu0 %v82
    %910 = vmatpush.msra.mxu0 %v78
    %911 = vmatpush.msra.mxu0 %v74
    %912 = vmatpush.msra.mxu0 %v70
    %913 = vmatpush.msra.mxu0 %v66
    %914 = vmatpush.msra.mxu0 %v62
    %915 = vmatpush.msra.mxu0 %v58
    %916 = vmatpush.msra.mxu0 %v54
    %917 = vmatpush.msra.mxu0 %v50
    %918 = vmatpush.msra.mxu0 %v46
    %919 = vmatpush.msra.mxu0 %v42
    %920 = vmatmul.f32.gmra.mxu0 %v902
    %v921 = vpop.f32.mrf.mxu0
    %v922 = vadd.f32 %v177, %v921
    %923 = vdwg.mxu0
    %924 = vmatpush.msra.mxu0 %v166
    %925 = vmatpush.msra.mxu0 %v162
    %926 = vmatpush.msra.mxu0 %v158
    %927 = vmatpush.msra.mxu0 %v154
    %928 = vmatpush.msra.mxu0 %v150
    %929 = vmatpush.msra.mxu0 %v146
    %930 = vmatpush.msra.mxu0 %v142
    %931 = vmatpush.msra.mxu0 %v138
    %932 = vmatpush.msra.mxu0 %v134
    %933 = vmatpush.msra.mxu0 %v130
    %934 = vmatpush.msra.mxu0 %v126
    %935 = vmatpush.msra.mxu0 %v122
    %936 = vmatpush.msra.mxu0 %v118
    %937 = vmatpush.msra.mxu0 %v114
    %938 = vmatpush.msra.mxu0 %v110
    %939 = vmatpush.msra.mxu0 %v106
    %940 = vmatmul.f32.gmra.mxu0 %v903
    %v941 = vpop.f32.mrf.mxu0
    %v942 = vadd.f32 %v922, %v941
    %943 = vdwg.mxu0
    %944 = vmatpush.msra.mxu0 %v103
    %945 = vmatpush.msra.mxu0 %v99
    %946 = vmatpush.msra.mxu0 %v95
    %947 = vmatpush.msra.mxu0 %v91
    %948 = vmatpush.msra.mxu0 %v87
    %949 = vmatpush.msra.mxu0 %v83
    %950 = vmatpush.msra.mxu0 %v79
    %951 = vmatpush.msra.mxu0 %v75
    %952 = vmatpush.msra.mxu0 %v71
    %953 = vmatpush.msra.mxu0 %v67
    %954 = vmatpush.msra.mxu0 %v63
    %955 = vmatpush.msra.mxu0 %v59
    %956 = vmatpush.msra.mxu0 %v55
    %957 = vmatpush.msra.mxu0 %v51
    %958 = vmatpush.msra.mxu0 %v47
    %959 = vmatpush.msra.mxu0 %v43
    %960 = vmatmul.f32.gmra.mxu0 %v902
    %v961 = vpop.f32.mrf.mxu0
    %v962 = vadd.f32 %v178, %v961
    %963 = vdwg.mxu0
    %964 = vmatpush.msra.mxu0 %v167
    %965 = vmatpush.msra.mxu0 %v163
    %966 = vmatpush.msra.mxu0 %v159
    %967 = vmatpush.msra.mxu0 %v155
    %968 = vmatpush.msra.mxu0 %v151
    %969 = vmatpush.msra.mxu0 %v147
    %970 = vmatpush.msra.mxu0 %v143
    %971 = vmatpush.msra.mxu0 %v139
    %972 = vmatpush.msra.mxu0 %v135
    %973 = vmatpush.msra.mxu0 %v131
    %974 = vmatpush.msra.mxu0 %v127
    %975 = vmatpush.msra.mxu0 %v123
    %976 = vmatpush.msra.mxu0 %v119
    %977 = vmatpush.msra.mxu0 %v115
    %978 = vmatpush.msra.mxu0 %v111
    %979 = vmatpush.msra.mxu0 %v107
    %980 = vmatmul.f32.gmra.mxu0 %v903
    %v981 = vpop.f32.mrf.mxu0
    %v982 = vadd.f32 %v962, %v981
    %983 = vdwg.mxu0
    %984 = vmatpush.msra.mxu0 %v104
    %985 = vmatpush.msra.mxu0 %v100
    %986 = vmatpush.msra.mxu0 %v96
    %987 = vmatpush.msra.mxu0 %v92
    %988 = vmatpush.msra.mxu0 %v88
    %989 = vmatpush.msra.mxu0 %v84
    %990 = vmatpush.msra.mxu0 %v80
    %991 = vmatpush.msra.mxu0 %v76
    %992 = vmatpush.msra.mxu0 %v72
    %993 = vmatpush.msra.mxu0 %v68
    %994 = vmatpush.msra.mxu0 %v64
    %995 = vmatpush.msra.mxu0 %v60
    %996 = vmatpush.msra.mxu0 %v56
    %997 = vmatpush.msra.mxu0 %v52
    %998 = vmatpush.msra.mxu0 %v48
    %999 = vmatpush.msra.mxu0 %v44
    %1000 = vmatmul.f32.gmra.mxu0 %v902
    %v1001 = vpop.f32.mrf.mxu0
    %v1002 = vadd.f32 %v179, %v1001
    %1003 = vdwg.mxu0
    %1004 = vmatpush.msra.mxu0 %v168
    %1005 = vmatpush.msra.mxu0 %v164
    %1006 = vmatpush.msra.mxu0 %v160
    %1007 = vmatpush.msra.mxu0 %v156
    %1008 = vmatpush.msra.mxu0 %v152
    %1009 = vmatpush.msra.mxu0 %v148
    %1010 = vmatpush.msra.mxu0 %v144
    %1011 = vmatpush.msra.mxu0 %v140
    %1012 = vmatpush.msra.mxu0 %v136
    %1013 = vmatpush.msra.mxu0 %v132
    %1014 = vmatpush.msra.mxu0 %v128
    %1015 = vmatpush.msra.mxu0 %v124
    %1016 = vmatpush.msra.mxu0 %v120
    %1017 = vmatpush.msra.mxu0 %v116
    %1018 = vmatpush.msra.mxu0 %v112
    %1019 = vmatpush.msra.mxu0 %v108
    %1020 = vmatmul.f32.gmra.mxu0 %v903
    %v1021 = vpop.f32.mrf.mxu0
    %v1022 = vadd.f32 %v1002, %v1021
    %1023 = vdwg.mxu0
    %1024 = vmatpush.msra.mxu0 %v105
    %1025 = vmatpush.msra.mxu0 %v101
    %1026 = vmatpush.msra.mxu0 %v97
    %1027 = vmatpush.msra.mxu0 %v93
    %1028 = vmatpush.msra.mxu0 %v89
    %1029 = vmatpush.msra.mxu0 %v85
    %1030 = vmatpush.msra.mxu0 %v81
    %1031 = vmatpush.msra.mxu0 %v77
    %1032 = vmatpush.msra.mxu0 %v73
    %1033 = vmatpush.msra.mxu0 %v69
    %1034 = vmatpush.msra.mxu0 %v65
    %1035 = vmatpush.msra.mxu0 %v61
    %1036 = vmatpush.msra.mxu0 %v57
    %1037 = vmatpush.msra.mxu0 %v53
    %1038 = vmatpush.msra.mxu0 %v49
    %1039 = vmatpush.msra.mxu0 %v45
    %1040 = vmatmul.f32.gmra.mxu0 %v902
    %v1041 = vpop.f32.mrf.mxu0
    %v1042 = vadd.f32 %v180, %v1041
    %1043 = vdwg.mxu0
    %1044 = vmatpush.msra.mxu0 %v169
    %1045 = vmatpush.msra.mxu0 %v165
    %1046 = vmatpush.msra.mxu0 %v161
    %1047 = vmatpush.msra.mxu0 %v157
    %1048 = vmatpush.msra.mxu0 %v153
    %1049 = vmatpush.msra.mxu0 %v149
    %1050 = vmatpush.msra.mxu0 %v145
    %1051 = vmatpush.msra.mxu0 %v141
    %1052 = vmatpush.msra.mxu0 %v137
    %1053 = vmatpush.msra.mxu0 %v133
    %1054 = vmatpush.msra.mxu0 %v129
    %1055 = vmatpush.msra.mxu0 %v125
    %1056 = vmatpush.msra.mxu0 %v121
    %1057 = vmatpush.msra.mxu0 %v117
    %1058 = vmatpush.msra.mxu0 %v113
    %1059 = vmatpush.msra.mxu0 %v109
    %1060 = vmatmul.f32.gmra.mxu0 %v903
    %v1061 = vpop.f32.mrf.mxu0
    %v1062 = vadd.f32 %v1042, %v1061
    %1063 = vdwg.mxu0
    %v1064 = vxor.u32 %v942, 2147483648
    %v1065 = vmul.f32 %v1064, 1.442695
    %v1066 = vpow.pop %v1065
    %v1067 = vadd.f32 %v1066, 1.0
    %v1068 = vrcp.pop %v1067
    %v1069 = vmul.f32 %v1067, %v1068
    %v1070 = vsub.f32 1.0, %v1069
    %v1071 = vmul.f32 %v1068, %v1070
    %v1072 = vadd.f32 %v1068, %v1071
    %vm1073 = vweird.f32 %v1067
    %vm1074 = vweird.f32 %v1068
    %vm1075 = vmor %vm1073, %vm1074
    %v1076 = vsel %vm1075, %v1068, %v1072
    %v1077 = vand.u32 2147483647, %v1067
    %vm1078 = vcmp.eq.f32.partialorder %v1077, 8.507059e+37
    %v1079 = vand.u32 %v1067, 2147483648
    %v1080 = vor.u32 1.1754944e-38, %v1079
    %v1081 = vsel %vm1078, %v1080, %v1076
    %v1082 = vmul.f32 1.0, %v1081
    %v1083 = vxor.u32 %v982, 2147483648
    %v1084 = vmul.f32 %v1083, 1.442695
    %v1085 = vpow.pop %v1084
    %v1086 = vadd.f32 %v1085, 1.0
    %v1087 = vrcp.pop %v1086
    %v1088 = vmul.f32 %v1086, %v1087
    %v1089 = vsub.f32 1.0, %v1088
    %v1090 = vmul.f32 %v1087, %v1089
    %v1091 = vadd.f32 %v1087, %v1090
    %vm1092 = vweird.f32 %v1086
    %vm1093 = vweird.f32 %v1087
    %vm1094 = vmor %vm1092, %vm1093
    %v1095 = vsel %vm1094, %v1087, %v1091
    %v1096 = vand.u32 2147483647, %v1086
    %vm1097 = vcmp.eq.f32.partialorder %v1096, 8.507059e+37
    %v1098 = vand.u32 %v1086, 2147483648
    %v1099 = vor.u32 1.1754944e-38, %v1098
    %v1100 = vsel %vm1097, %v1099, %v1095
    %v1101 = vmul.f32 1.0, %v1100
    %v1102 = vtanh.pop %v1022
    %v1103 = vxor.u32 %v1062, 2147483648
    %v1104 = vmul.f32 %v1103, 1.442695
    %v1105 = vpow.pop %v1104
    %v1106 = vadd.f32 %v1105, 1.0
    %v1107 = vrcp.pop %v1106
    %v1108 = vmul.f32 %v1106, %v1107
    %v1109 = vsub.f32 1.0, %v1108
    %v1110 = vmul.f32 %v1107, %v1109
    %v1111 = vadd.f32 %v1107, %v1110
    %vm1112 = vweird.f32 %v1106
    %vm1113 = vweird.f32 %v1107
    %vm1114 = vmor %vm1112, %vm1113
    %v1115 = vsel %vm1114, %v1107, %v1111
    %v1116 = vand.u32 2147483647, %v1106
    %vm1117 = vcmp.eq.f32.partialorder %v1116, 8.507059e+37
    %v1118 = vand.u32 %v1106, 2147483648
    %v1119 = vor.u32 1.1754944e-38, %v1118
    %v1120 = vsel %vm1117, %v1119, %v1115
    %v1121 = vmul.f32 1.0, %v1120
    %v1122 = vmul.f32 %v1101, %v895
    %v1123 = vmul.f32 %v1082, %v1102
    %v1124 = vadd.f32 %v1122, %v1123
    %v1125 = vtanh.pop %v1124
    %v1126 = vmul.f32 %v1121, %v1125
    %v1127 = vld [vmem:[%s1] sm:$0xff]
    %vm1128 = vcmp.gt.s32.totalorder %v1127, 3
    %v1129 = vsel %vm1128, 1, 0
    %1130 = vset.pattern.permute.xlu0 0
    %1131 = vperm.xlu0 %1130, %v1129
    %v1132 = vpop.permute.xlu0 %1131
    %vm1133 = vcmp.eq.s32.totalorder %v1132, 1
    %v1134 = vsel %vm1133, %v1126, %v894
    %v1135 = vsel %vm1133, %v1124, %v895
    %v1136 = vsel %vm1133, %v1126, 0.0
    %v1137 = vadd.f32 %v897, %v1136
    %s1138 = scalar_lea.vmem %s0, 32
    %v1139 = vld [vmem:[%s1138] sm:$0xff]
    %1140 = vst [vmem:[#allocation2] sm:$0xff] %v1139
    %1141 = vst [vmem:[#allocation2 + $0x8] sm:$0xff] %v1134
    %v1142 = vld [vmem:[#allocation2] sm:$0xff]
    %v1143 = vld [vmem:[#allocation2 + $0x8] sm:$0xff]
    %1144 = vmatpush.msra.mxu0 %v102
    %1145 = vmatpush.msra.mxu0 %v98
    %1146 = vmatpush.msra.mxu0 %v94
    %1147 = vmatpush.msra.mxu0 %v90
    %1148 = vmatpush.msra.mxu0 %v86
    %1149 = vmatpush.msra.mxu0 %v82
    %1150 = vmatpush.msra.mxu0 %v78
    %1151 = vmatpush.msra.mxu0 %v74
    %1152 = vmatpush.msra.mxu0 %v70
    %1153 = vmatpush.msra.mxu0 %v66
    %1154 = vmatpush.msra.mxu0 %v62
    %1155 = vmatpush.msra.mxu0 %v58
    %1156 = vmatpush.msra.mxu0 %v54
    %1157 = vmatpush.msra.mxu0 %v50
    %1158 = vmatpush.msra.mxu0 %v46
    %1159 = vmatpush.msra.mxu0 %v42
    %1160 = vmatmul.f32.gmra.mxu0 %v1142
    %v1161 = vpop.f32.mrf.mxu0
    %v1162 = vadd.f32 %v177, %v1161
    %1163 = vdwg.mxu0
    %1164 = vmatpush.msra.mxu0 %v166
    %1165 = vmatpush.msra.mxu0 %v162
    %1166 = vmatpush.msra.mxu0 %v158
    %1167 = vmatpush.msra.mxu0 %v154
    %1168 = vmatpush.msra.mxu0 %v150
    %1169 = vmatpush.msra.mxu0 %v146
    %1170 = vmatpush.msra.mxu0 %v142
    %1171 = vmatpush.msra.mxu0 %v138
    %1172 = vmatpush.msra.mxu0 %v134
    %1173 = vmatpush.msra.mxu0 %v130
    %1174 = vmatpush.msra.mxu0 %v126
    %1175 = vmatpush.msra.mxu0 %v122
    %1176 = vmatpush.msra.mxu0 %v118
    %1177 = vmatpush.msra.mxu0 %v114
    %1178 = vmatpush.msra.mxu0 %v110
    %1179 = vmatpush.msra.mxu0 %v106
    %1180 = vmatmul.f32.gmra.mxu0 %v1143
    %v1181 = vpop.f32.mrf.mxu0
    %v1182 = vadd.f32 %v1162, %v1181
    %1183 = vdwg.mxu0
    %1184 = vmatpush.msra.mxu0 %v103
    %1185 = vmatpush.msra.mxu0 %v99
    %1186 = vmatpush.msra.mxu0 %v95
    %1187 = vmatpush.msra.mxu0 %v91
    %1188 = vmatpush.msra.mxu0 %v87
    %1189 = vmatpush.msra.mxu0 %v83
    %1190 = vmatpush.msra.mxu0 %v79
    %1191 = vmatpush.msra.mxu0 %v75
    %1192 = vmatpush.msra.mxu0 %v71
    %1193 = vmatpush.msra.mxu0 %v67
    %1194 = vmatpush.msra.mxu0 %v63
    %1195 = vmatpush.msra.mxu0 %v59
    %1196 = vmatpush.msra.mxu0 %v55
    %1197 = vmatpush.msra.mxu0 %v51
    %1198 = vmatpush.msra.mxu0 %v47
    %1199 = vmatpush.msra.mxu0 %v43
    %1200 = vmatmul.f32.gmra.mxu0 %v1142
    %v1201 = vpop.f32.mrf.mxu0
    %v1202 = vadd.f32 %v178, %v1201
    %1203 = vdwg.mxu0
    %1204 = vmatpush.msra.mxu0 %v167
    %1205 = vmatpush.msra.mxu0 %v163
    %1206 = vmatpush.msra.mxu0 %v159
    %1207 = vmatpush.msra.mxu0 %v155
    %1208 = vmatpush.msra.mxu0 %v151
    %1209 = vmatpush.msra.mxu0 %v147
    %1210 = vmatpush.msra.mxu0 %v143
    %1211 = vmatpush.msra.mxu0 %v139
    %1212 = vmatpush.msra.mxu0 %v135
    %1213 = vmatpush.msra.mxu0 %v131
    %1214 = vmatpush.msra.mxu0 %v127
    %1215 = vmatpush.msra.mxu0 %v123
    %1216 = vmatpush.msra.mxu0 %v119
    %1217 = vmatpush.msra.mxu0 %v115
    %1218 = vmatpush.msra.mxu0 %v111
    %1219 = vmatpush.msra.mxu0 %v107
    %1220 = vmatmul.f32.gmra.mxu0 %v1143
    %v1221 = vpop.f32.mrf.mxu0
    %v1222 = vadd.f32 %v1202, %v1221
    %1223 = vdwg.mxu0
    %1224 = vmatpush.msra.mxu0 %v104
    %1225 = vmatpush.msra.mxu0 %v100
    %1226 = vmatpush.msra.mxu0 %v96
    %1227 = vmatpush.msra.mxu0 %v92
    %1228 = vmatpush.msra.mxu0 %v88
    %1229 = vmatpush.msra.mxu0 %v84
    %1230 = vmatpush.msra.mxu0 %v80
    %1231 = vmatpush.msra.mxu0 %v76
    %1232 = vmatpush.msra.mxu0 %v72
    %1233 = vmatpush.msra.mxu0 %v68
    %1234 = vmatpush.msra.mxu0 %v64
    %1235 = vmatpush.msra.mxu0 %v60
    %1236 = vmatpush.msra.mxu0 %v56
    %1237 = vmatpush.msra.mxu0 %v52
    %1238 = vmatpush.msra.mxu0 %v48
    %1239 = vmatpush.msra.mxu0 %v44
    %1240 = vmatmul.f32.gmra.mxu0 %v1142
    %v1241 = vpop.f32.mrf.mxu0
    %v1242 = vadd.f32 %v179, %v1241
    %1243 = vdwg.mxu0
    %1244 = vmatpush.msra.mxu0 %v168
    %1245 = vmatpush.msra.mxu0 %v164
    %1246 = vmatpush.msra.mxu0 %v160
    %1247 = vmatpush.msra.mxu0 %v156
    %1248 = vmatpush.msra.mxu0 %v152
    %1249 = vmatpush.msra.mxu0 %v148
    %1250 = vmatpush.msra.mxu0 %v144
    %1251 = vmatpush.msra.mxu0 %v140
    %1252 = vmatpush.msra.mxu0 %v136
    %1253 = vmatpush.msra.mxu0 %v132
    %1254 = vmatpush.msra.mxu0 %v128
    %1255 = vmatpush.msra.mxu0 %v124
    %1256 = vmatpush.msra.mxu0 %v120
    %1257 = vmatpush.msra.mxu0 %v116
    %1258 = vmatpush.msra.mxu0 %v112
    %1259 = vmatpush.msra.mxu0 %v108
    %1260 = vmatmul.f32.gmra.mxu0 %v1143
    %v1261 = vpop.f32.mrf.mxu0
    %v1262 = vadd.f32 %v1242, %v1261
    %1263 = vdwg.mxu0
    %1264 = vmatpush.msra.mxu0 %v105
    %1265 = vmatpush.msra.mxu0 %v101
    %1266 = vmatpush.msra.mxu0 %v97
    %1267 = vmatpush.msra.mxu0 %v93
    %1268 = vmatpush.msra.mxu0 %v89
    %1269 = vmatpush.msra.mxu0 %v85
    %1270 = vmatpush.msra.mxu0 %v81
    %1271 = vmatpush.msra.mxu0 %v77
    %1272 = vmatpush.msra.mxu0 %v73
    %1273 = vmatpush.msra.mxu0 %v69
    %1274 = vmatpush.msra.mxu0 %v65
    %1275 = vmatpush.msra.mxu0 %v61
    %1276 = vmatpush.msra.mxu0 %v57
    %1277 = vmatpush.msra.mxu0 %v53
    %1278 = vmatpush.msra.mxu0 %v49
    %1279 = vmatpush.msra.mxu0 %v45
    %1280 = vmatmul.f32.gmra.mxu0 %v1142
    %v1281 = vpop.f32.mrf.mxu0
    %v1282 = vadd.f32 %v180, %v1281
    %1283 = vdwg.mxu0
    %1284 = vmatpush.msra.mxu0 %v169
    %1285 = vmatpush.msra.mxu0 %v165
    %1286 = vmatpush.msra.mxu0 %v161
    %1287 = vmatpush.msra.mxu0 %v157
    %1288 = vmatpush.msra.mxu0 %v153
    %1289 = vmatpush.msra.mxu0 %v149
    %1290 = vmatpush.msra.mxu0 %v145
    %1291 = vmatpush.msra.mxu0 %v141
    %1292 = vmatpush.msra.mxu0 %v137
    %1293 = vmatpush.msra.mxu0 %v133
    %1294 = vmatpush.msra.mxu0 %v129
    %1295 = vmatpush.msra.mxu0 %v125
    %1296 = vmatpush.msra.mxu0 %v121
    %1297 = vmatpush.msra.mxu0 %v117
    %1298 = vmatpush.msra.mxu0 %v113
    %1299 = vmatpush.msra.mxu0 %v109
    %1300 = vmatmul.f32.gmra.mxu0 %v1143
    %v1301 = vpop.f32.mrf.mxu0
    %v1302 = vadd.f32 %v1282, %v1301
    %1303 = vdwg.mxu0
    %v1304 = vxor.u32 %v1182, 2147483648
    %v1305 = vmul.f32 %v1304, 1.442695
    %v1306 = vpow.pop %v1305
    %v1307 = vadd.f32 %v1306, 1.0
    %v1308 = vrcp.pop %v1307
    %v1309 = vmul.f32 %v1307, %v1308
    %v1310 = vsub.f32 1.0, %v1309
    %v1311 = vmul.f32 %v1308, %v1310
    %v1312 = vadd.f32 %v1308, %v1311
    %vm1313 = vweird.f32 %v1307
    %vm1314 = vweird.f32 %v1308
    %vm1315 = vmor %vm1313, %vm1314
    %v1316 = vsel %vm1315, %v1308, %v1312
    %v1317 = vand.u32 2147483647, %v1307
    %vm1318 = vcmp.eq.f32.partialorder %v1317, 8.507059e+37
    %v1319 = vand.u32 %v1307, 2147483648
    %v1320 = vor.u32 1.1754944e-38, %v1319
    %v1321 = vsel %vm1318, %v1320, %v1316
    %v1322 = vmul.f32 1.0, %v1321
    %v1323 = vxor.u32 %v1222, 2147483648
    %v1324 = vmul.f32 %v1323, 1.442695
    %v1325 = vpow.pop %v1324
    %v1326 = vadd.f32 %v1325, 1.0
    %v1327 = vrcp.pop %v1326
    %v1328 = vmul.f32 %v1326, %v1327
    %v1329 = vsub.f32 1.0, %v1328
    %v1330 = vmul.f32 %v1327, %v1329
    %v1331 = vadd.f32 %v1327, %v1330
    %vm1332 = vweird.f32 %v1326
    %vm1333 = vweird.f32 %v1327
    %vm1334 = vmor %vm1332, %vm1333
    %v1335 = vsel %vm1334, %v1327, %v1331
    %v1336 = vand.u32 2147483647, %v1326
    %vm1337 = vcmp.eq.f32.partialorder %v1336, 8.507059e+37
    %v1338 = vand.u32 %v1326, 2147483648
    %v1339 = vor.u32 1.1754944e-38, %v1338
    %v1340 = vsel %vm1337, %v1339, %v1335
    %v1341 = vmul.f32 1.0, %v1340
    %v1342 = vtanh.pop %v1262
    %v1343 = vxor.u32 %v1302, 2147483648
    %v1344 = vmul.f32 %v1343, 1.442695
    %v1345 = vpow.pop %v1344
    %v1346 = vadd.f32 %v1345, 1.0
    %v1347 = vrcp.pop %v1346
    %v1348 = vmul.f32 %v1346, %v1347
    %v1349 = vsub.f32 1.0, %v1348
    %v1350 = vmul.f32 %v1347, %v1349
    %v1351 = vadd.f32 %v1347, %v1350
    %vm1352 = vweird.f32 %v1346
    %vm1353 = vweird.f32 %v1347
    %vm1354 = vmor %vm1352, %vm1353
    %v1355 = vsel %vm1354, %v1347, %v1351
    %v1356 = vand.u32 2147483647, %v1346
    %vm1357 = vcmp.eq.f32.partialorder %v1356, 8.507059e+37
    %v1358 = vand.u32 %v1346, 2147483648
    %v1359 = vor.u32 1.1754944e-38, %v1358
    %v1360 = vsel %vm1357, %v1359, %v1355
    %v1361 = vmul.f32 1.0, %v1360
    %v1362 = vmul.f32 %v1341, %v1135
    %v1363 = vmul.f32 %v1322, %v1342
    %v1364 = vadd.f32 %v1362, %v1363
    %v1365 = vtanh.pop %v1364
    %v1366 = vmul.f32 %v1361, %v1365
    %v1367 = vld [vmem:[%s1] sm:$0xff]
    %vm1368 = vcmp.gt.s32.totalorder %v1367, 4
    %v1369 = vsel %vm1368, 1, 0
    %1370 = vset.pattern.permute.xlu0 0
    %1371 = vperm.xlu0 %1370, %v1369
    %v1372 = vpop.permute.xlu0 %1371
    %vm1373 = vcmp.eq.s32.totalorder %v1372, 1
    %v1374 = vsel %vm1373, %v1366, %v1134
    %v1375 = vsel %vm1373, %v1364, %v1135
    %v1376 = vsel %vm1373, %v1366, 0.0
    %v1377 = vadd.f32 %v1137, %v1376
    %s1378 = scalar_lea.vmem %s0, 40
    %v1379 = vld [vmem:[%s1378] sm:$0xff]
    %1380 = vst [vmem:[#allocation2] sm:$0xff] %v1379
    %1381 = vst [vmem:[#allocation2 + $0x8] sm:$0xff] %v1374
    %v1382 = vld [vmem:[#allocation2] sm:$0xff]
    %v1383 = vld [vmem:[#allocation2 + $0x8] sm:$0xff]
    %1384 = vmatpush.msra.mxu0 %v102
    %1385 = vmatpush.msra.mxu0 %v98
    %1386 = vmatpush.msra.mxu0 %v94
    %1387 = vmatpush.msra.mxu0 %v90
    %1388 = vmatpush.msra.mxu0 %v86
    %1389 = vmatpush.msra.mxu0 %v82
    %1390 = vmatpush.msra.mxu0 %v78
    %1391 = vmatpush.msra.mxu0 %v74
    %1392 = vmatpush.msra.mxu0 %v70
    %1393 = vmatpush.msra.mxu0 %v66
    %1394 = vmatpush.msra.mxu0 %v62
    %1395 = vmatpush.msra.mxu0 %v58
    %1396 = vmatpush.msra.mxu0 %v54
    %1397 = vmatpush.msra.mxu0 %v50
    %1398 = vmatpush.msra.mxu0 %v46
    %1399 = vmatpush.msra.mxu0 %v42
    %1400 = vmatmul.f32.gmra.mxu0 %v1382
    %v1401 = vpop.f32.mrf.mxu0
    %v1402 = vadd.f32 %v177, %v1401
    %1403 = vdwg.mxu0
    %1404 = vmatpush.msra.mxu0 %v166
    %1405 = vmatpush.msra.mxu0 %v162
    %1406 = vmatpush.msra.mxu0 %v158
    %1407 = vmatpush.msra.mxu0 %v154
    %1408 = vmatpush.msra.mxu0 %v150
    %1409 = vmatpush.msra.mxu0 %v146
    %1410 = vmatpush.msra.mxu0 %v142
    %1411 = vmatpush.msra.mxu0 %v138
    %1412 = vmatpush.msra.mxu0 %v134
    %1413 = vmatpush.msra.mxu0 %v130
    %1414 = vmatpush.msra.mxu0 %v126
    %1415 = vmatpush.msra.mxu0 %v122
    %1416 = vmatpush.msra.mxu0 %v118
    %1417 = vmatpush.msra.mxu0 %v114
    %1418 = vmatpush.msra.mxu0 %v110
    %1419 = vmatpush.msra.mxu0 %v106
    %1420 = vmatmul.f32.gmra.mxu0 %v1383
    %v1421 = vpop.f32.mrf.mxu0
    %v1422 = vadd.f32 %v1402, %v1421
    %1423 = vdwg.mxu0
    %1424 = vmatpush.msra.mxu0 %v103
    %1425 = vmatpush.msra.mxu0 %v99
    %1426 = vmatpush.msra.mxu0 %v95
    %1427 = vmatpush.msra.mxu0 %v91
    %1428 = vmatpush.msra.mxu0 %v87
    %1429 = vmatpush.msra.mxu0 %v83
    %1430 = vmatpush.msra.mxu0 %v79
    %1431 = vmatpush.msra.mxu0 %v75
    %1432 = vmatpush.msra.mxu0 %v71
    %1433 = vmatpush.msra.mxu0 %v67
    %1434 = vmatpush.msra.mxu0 %v63
    %1435 = vmatpush.msra.mxu0 %v59
    %1436 = vmatpush.msra.mxu0 %v55
    %1437 = vmatpush.msra.mxu0 %v51
    %1438 = vmatpush.msra.mxu0 %v47
    %1439 = vmatpush.msra.mxu0 %v43
    %1440 = vmatmul.f32.gmra.mxu0 %v1382
    %v1441 = vpop.f32.mrf.mxu0
    %v1442 = vadd.f32 %v178, %v1441
    %1443 = vdwg.mxu0
    %1444 = vmatpush.msra.mxu0 %v167
    %1445 = vmatpush.msra.mxu0 %v163
    %1446 = vmatpush.msra.mxu0 %v159
    %1447 = vmatpush.msra.mxu0 %v155
    %1448 = vmatpush.msra.mxu0 %v151
    %1449 = vmatpush.msra.mxu0 %v147
    %1450 = vmatpush.msra.mxu0 %v143
    %1451 = vmatpush.msra.mxu0 %v139
    %1452 = vmatpush.msra.mxu0 %v135
    %1453 = vmatpush.msra.mxu0 %v131
    %1454 = vmatpush.msra.mxu0 %v127
    %1455 = vmatpush.msra.mxu0 %v123
    %1456 = vmatpush.msra.mxu0 %v119
    %1457 = vmatpush.msra.mxu0 %v115
    %1458 = vmatpush.msra.mxu0 %v111
    %1459 = vmatpush.msra.mxu0 %v107
    %1460 = vmatmul.f32.gmra.mxu0 %v1383
    %v1461 = vpop.f32.mrf.mxu0
    %v1462 = vadd.f32 %v1442, %v1461
    %1463 = vdwg.mxu0
    %1464 = vmatpush.msra.mxu0 %v104
    %1465 = vmatpush.msra.mxu0 %v100
    %1466 = vmatpush.msra.mxu0 %v96
    %1467 = vmatpush.msra.mxu0 %v92
    %1468 = vmatpush.msra.mxu0 %v88
    %1469 = vmatpush.msra.mxu0 %v84
    %1470 = vmatpush.msra.mxu0 %v80
    %1471 = vmatpush.msra.mxu0 %v76
    %1472 = vmatpush.msra.mxu0 %v72
    %1473 = vmatpush.msra.mxu0 %v68
    %1474 = vmatpush.msra.mxu0 %v64
    %1475 = vmatpush.msra.mxu0 %v60
    %1476 = vmatpush.msra.mxu0 %v56
    %1477 = vmatpush.msra.mxu0 %v52
    %1478 = vmatpush.msra.mxu0 %v48
    %1479 = vmatpush.msra.mxu0 %v44
    %1480 = vmatmul.f32.gmra.mxu0 %v1382
    %v1481 = vpop.f32.mrf.mxu0
    %v1482 = vadd.f32 %v179, %v1481
    %1483 = vdwg.mxu0
    %1484 = vmatpush.msra.mxu0 %v168
    %1485 = vmatpush.msra.mxu0 %v164
    %1486 = vmatpush.msra.mxu0 %v160
    %1487 = vmatpush.msra.mxu0 %v156
    %1488 = vmatpush.msra.mxu0 %v152
    %1489 = vmatpush.msra.mxu0 %v148
    %1490 = vmatpush.msra.mxu0 %v144
    %1491 = vmatpush.msra.mxu0 %v140
    %1492 = vmatpush.msra.mxu0 %v136
    %1493 = vmatpush.msra.mxu0 %v132
    %1494 = vmatpush.msra.mxu0 %v128
    %1495 = vmatpush.msra.mxu0 %v124
    %1496 = vmatpush.msra.mxu0 %v120
    %1497 = vmatpush.msra.mxu0 %v116
    %1498 = vmatpush.msra.mxu0 %v112
    %1499 = vmatpush.msra.mxu0 %v108
    %1500 = vmatmul.f32.gmra.mxu0 %v1383
    %v1501 = vpop.f32.mrf.mxu0
    %v1502 = vadd.f32 %v1482, %v1501
    %1503 = vdwg.mxu0
    %1504 = vmatpush.msra.mxu0 %v105
    %1505 = vmatpush.msra.mxu0 %v101
    %1506 = vmatpush.msra.mxu0 %v97
    %1507 = vmatpush.msra.mxu0 %v93
    %1508 = vmatpush.msra.mxu0 %v89
    %1509 = vmatpush.msra.mxu0 %v85
    %1510 = vmatpush.msra.mxu0 %v81
    %1511 = vmatpush.msra.mxu0 %v77
    %1512 = vmatpush.msra.mxu0 %v73
    %1513 = vmatpush.msra.mxu0 %v69
    %1514 = vmatpush.msra.mxu0 %v65
    %1515 = vmatpush.msra.mxu0 %v61
    %1516 = vmatpush.msra.mxu0 %v57
    %1517 = vmatpush.msra.mxu0 %v53
    %1518 = vmatpush.msra.mxu0 %v49
    %1519 = vmatpush.msra.mxu0 %v45
    %1520 = vmatmul.f32.gmra.mxu0 %v1382
    %v1521 = vpop.f32.mrf.mxu0
    %v1522 = vadd.f32 %v180, %v1521
    %1523 = vdwg.mxu0
    %1524 = vmatpush.msra.mxu0 %v169
    %1525 = vmatpush.msra.mxu0 %v165
    %1526 = vmatpush.msra.mxu0 %v161
    %1527 = vmatpush.msra.mxu0 %v157
    %1528 = vmatpush.msra.mxu0 %v153
    %1529 = vmatpush.msra.mxu0 %v149
    %1530 = vmatpush.msra.mxu0 %v145
    %1531 = vmatpush.msra.mxu0 %v141
    %1532 = vmatpush.msra.mxu0 %v137
    %1533 = vmatpush.msra.mxu0 %v133
    %1534 = vmatpush.msra.mxu0 %v129
    %1535 = vmatpush.msra.mxu0 %v125
    %1536 = vmatpush.msra.mxu0 %v121
    %1537 = vmatpush.msra.mxu0 %v117
    %1538 = vmatpush.msra.mxu0 %v113
    %1539 = vmatpush.msra.mxu0 %v109
    %1540 = vmatmul.f32.gmra.mxu0 %v1383
    %v1541 = vpop.f32.mrf.mxu0
    %v1542 = vadd.f32 %v1522, %v1541
    %1543 = vdwg.mxu0
    %v1544 = vxor.u32 %v1422, 2147483648
    %v1545 = vmul.f32 %v1544, 1.442695
    %v1546 = vpow.pop %v1545
    %v1547 = vadd.f32 %v1546, 1.0
    %v1548 = vrcp.pop %v1547
    %v1549 = vmul.f32 %v1547, %v1548
    %v1550 = vsub.f32 1.0, %v1549
    %v1551 = vmul.f32 %v1548, %v1550
    %v1552 = vadd.f32 %v1548, %v1551
    %vm1553 = vweird.f32 %v1547
    %vm1554 = vweird.f32 %v1548
    %vm1555 = vmor %vm1553, %vm1554
    %v1556 = vsel %vm1555, %v1548, %v1552
    %v1557 = vand.u32 2147483647, %v1547
    %vm1558 = vcmp.eq.f32.partialorder %v1557, 8.507059e+37
    %v1559 = vand.u32 %v1547, 2147483648
    %v1560 = vor.u32 1.1754944e-38, %v1559
    %v1561 = vsel %vm1558, %v1560, %v1556
    %v1562 = vmul.f32 1.0, %v1561
    %v1563 = vxor.u32 %v1462, 2147483648
    %v1564 = vmul.f32 %v1563, 1.442695
    %v1565 = vpow.pop %v1564
    %v1566 = vadd.f32 %v1565, 1.0
    %v1567 = vrcp.pop %v1566
    %v1568 = vmul.f32 %v1566, %v1567
    %v1569 = vsub.f32 1.0, %v1568
    %v1570 = vmul.f32 %v1567, %v1569
    %v1571 = vadd.f32 %v1567, %v1570
    %vm1572 = vweird.f32 %v1566
    %vm1573 = vweird.f32 %v1567
    %vm1574 = vmor %vm1572, %vm1573
    %v1575 = vsel %vm1574, %v1567, %v1571
    %v1576 = vand.u32 2147483647, %v1566
    %vm1577 = vcmp.eq.f32.partialorder %v1576, 8.507059e+37
    %v1578 = vand.u32 %v1566, 2147483648
    %v1579 = vor.u32 1.1754944e-38, %v1578
    %v1580 = vsel %vm1577, %v1579, %v1575
    %v1581 = vmul.f32 1.0, %v1580
    %v1582 = vtanh.pop %v1502
    %v1583 = vxor.u32 %v1542, 2147483648
    %v1584 = vmul.f32 %v1583, 1.442695
    %v1585 = vpow.pop %v1584
    %v1586 = vadd.f32 %v1585, 1.0
    %v1587 = vrcp.pop %v1586
    %v1588 = vmul.f32 %v1586, %v1587
    %v1589 = vsub.f32 1.0, %v1588
    %v1590 = vmul.f32 %v1587, %v1589
    %v1591 = vadd.f32 %v1587, %v1590
    %vm1592 = vweird.f32 %v1586
    %vm1593 = vweird.f32 %v1587
    %vm1594 = vmor %vm1592, %vm1593
    %v1595 = vsel %vm1594, %v1587, %v1591
    %v1596 = vand.u32 2147483647, %v1586
    %vm1597 = vcmp.eq.f32.partialorder %v1596, 8.507059e+37
    %v1598 = vand.u32 %v1586, 2147483648
    %v1599 = vor.u32 1.1754944e-38, %v1598
    %v1600 = vsel %vm1597, %v1599, %v1595
    %v1601 = vmul.f32 1.0, %v1600
    %v1602 = vmul.f32 %v1581, %v1375
    %v1603 = vmul.f32 %v1562, %v1582
    %v1604 = vadd.f32 %v1602, %v1603
    %v1605 = vtanh.pop %v1604
    %v1606 = vmul.f32 %v1601, %v1605
    %v1607 = vld [vmem:[%s1] sm:$0xff]
    %vm1608 = vcmp.gt.s32.totalorder %v1607, 5
    %v1609 = vsel %vm1608, 1, 0
    %1610 = vset.pattern.permute.xlu0 0
    %1611 = vperm.xlu0 %1610, %v1609
    %v1612 = vpop.permute.xlu0 %1611
    %vm1613 = vcmp.eq.s32.totalorder %v1612, 1
    %v1614 = vsel %vm1613, %v1606, %v1374
    %v1615 = vsel %vm1613, %v1604, %v1375
    %v1616 = vsel %vm1613, %v1606, 0.0
    %v1617 = vadd.f32 %v1377, %v1616
    %s1618 = scalar_lea.vmem %s0, 48
    %v1619 = vld [vmem:[%s1618] sm:$0xff]
    %1620 = vst [vmem:[#allocation2] sm:$0xff] %v1619
    %1621 = vst [vmem:[#allocation2 + $0x8] sm:$0xff] %v1614
    %v1622 = vld [vmem:[#allocation2] sm:$0xff]
    %v1623 = vld [vmem:[#allocation2 + $0x8] sm:$0xff]
    %1624 = vmatpush.msra.mxu0 %v102
    %1625 = vmatpush.msra.mxu0 %v98
    %1626 = vmatpush.msra.mxu0 %v94
    %1627 = vmatpush.msra.mxu0 %v90
    %1628 = vmatpush.msra.mxu0 %v86
    %1629 = vmatpush.msra.mxu0 %v82
    %1630 = vmatpush.msra.mxu0 %v78
    %1631 = vmatpush.msra.mxu0 %v74
    %1632 = vmatpush.msra.mxu0 %v70
    %1633 = vmatpush.msra.mxu0 %v66
    %1634 = vmatpush.msra.mxu0 %v62
    %1635 = vmatpush.msra.mxu0 %v58
    %1636 = vmatpush.msra.mxu0 %v54
    %1637 = vmatpush.msra.mxu0 %v50
    %1638 = vmatpush.msra.mxu0 %v46
    %1639 = vmatpush.msra.mxu0 %v42
    %1640 = vmatmul.f32.gmra.mxu0 %v1622
    %v1641 = vpop.f32.mrf.mxu0
    %v1642 = vadd.f32 %v177, %v1641
    %1643 = vdwg.mxu0
    %1644 = vmatpush.msra.mxu0 %v166
    %1645 = vmatpush.msra.mxu0 %v162
    %1646 = vmatpush.msra.mxu0 %v158
    %1647 = vmatpush.msra.mxu0 %v154
    %1648 = vmatpush.msra.mxu0 %v150
    %1649 = vmatpush.msra.mxu0 %v146
    %1650 = vmatpush.msra.mxu0 %v142
    %1651 = vmatpush.msra.mxu0 %v138
    %1652 = vmatpush.msra.mxu0 %v134
    %1653 = vmatpush.msra.mxu0 %v130
    %1654 = vmatpush.msra.mxu0 %v126
    %1655 = vmatpush.msra.mxu0 %v122
    %1656 = vmatpush.msra.mxu0 %v118
    %1657 = vmatpush.msra.mxu0 %v114
    %1658 = vmatpush.msra.mxu0 %v110
    %1659 = vmatpush.msra.mxu0 %v106
    %1660 = vmatmul.f32.gmra.mxu0 %v1623
    %v1661 = vpop.f32.mrf.mxu0
    %v1662 = vadd.f32 %v1642, %v1661
    %1663 = vdwg.mxu0
    %1664 = vmatpush.msra.mxu0 %v103
    %1665 = vmatpush.msra.mxu0 %v99
    %1666 = vmatpush.msra.mxu0 %v95
    %1667 = vmatpush.msra.mxu0 %v91
    %1668 = vmatpush.msra.mxu0 %v87
    %1669 = vmatpush.msra.mxu0 %v83
    %1670 = vmatpush.msra.mxu0 %v79
    %1671 = vmatpush.msra.mxu0 %v75
    %1672 = vmatpush.msra.mxu0 %v71
    %1673 = vmatpush.msra.mxu0 %v67
    %1674 = vmatpush.msra.mxu0 %v63
    %1675 = vmatpush.msra.mxu0 %v59
    %1676 = vmatpush.msra.mxu0 %v55
    %1677 = vmatpush.msra.mxu0 %v51
    %1678 = vmatpush.msra.mxu0 %v47
    %1679 = vmatpush.msra.mxu0 %v43
    %1680 = vmatmul.f32.gmra.mxu0 %v1622
    %v1681 = vpop.f32.mrf.mxu0
    %v1682 = vadd.f32 %v178, %v1681
    %1683 = vdwg.mxu0
    %1684 = vmatpush.msra.mxu0 %v167
    %1685 = vmatpush.msra.mxu0 %v163
    %1686 = vmatpush.msra.mxu0 %v159
    %1687 = vmatpush.msra.mxu0 %v155
    %1688 = vmatpush.msra.mxu0 %v151
    %1689 = vmatpush.msra.mxu0 %v147
    %1690 = vmatpush.msra.mxu0 %v143
    %1691 = vmatpush.msra.mxu0 %v139
    %1692 = vmatpush.msra.mxu0 %v135
    %1693 = vmatpush.msra.mxu0 %v131
    %1694 = vmatpush.msra.mxu0 %v127
    %1695 = vmatpush.msra.mxu0 %v123
    %1696 = vmatpush.msra.mxu0 %v119
    %1697 = vmatpush.msra.mxu0 %v115
    %1698 = vmatpush.msra.mxu0 %v111
    %1699 = vmatpush.msra.mxu0 %v107
    %1700 = vmatmul.f32.gmra.mxu0 %v1623
    %v1701 = vpop.f32.mrf.mxu0
    %v1702 = vadd.f32 %v1682, %v1701
    %1703 = vdwg.mxu0
    %1704 = vmatpush.msra.mxu0 %v104
    %1705 = vmatpush.msra.mxu0 %v100
    %1706 = vmatpush.msra.mxu0 %v96
    %1707 = vmatpush.msra.mxu0 %v92
    %1708 = vmatpush.msra.mxu0 %v88
    %1709 = vmatpush.msra.mxu0 %v84
    %1710 = vmatpush.msra.mxu0 %v80
    %1711 = vmatpush.msra.mxu0 %v76
    %1712 = vmatpush.msra.mxu0 %v72
    %1713 = vmatpush.msra.mxu0 %v68
    %1714 = vmatpush.msra.mxu0 %v64
    %1715 = vmatpush.msra.mxu0 %v60
    %1716 = vmatpush.msra.mxu0 %v56
    %1717 = vmatpush.msra.mxu0 %v52
    %1718 = vmatpush.msra.mxu0 %v48
    %1719 = vmatpush.msra.mxu0 %v44
    %1720 = vmatmul.f32.gmra.mxu0 %v1622
    %v1721 = vpop.f32.mrf.mxu0
    %v1722 = vadd.f32 %v179, %v1721
    %1723 = vdwg.mxu0
    %1724 = vmatpush.msra.mxu0 %v168
    %1725 = vmatpush.msra.mxu0 %v164
    %1726 = vmatpush.msra.mxu0 %v160
    %1727 = vmatpush.msra.mxu0 %v156
    %1728 = vmatpush.msra.mxu0 %v152
    %1729 = vmatpush.msra.mxu0 %v148
    %1730 = vmatpush.msra.mxu0 %v144
    %1731 = vmatpush.msra.mxu0 %v140
    %1732 = vmatpush.msra.mxu0 %v136
    %1733 = vmatpush.msra.mxu0 %v132
    %1734 = vmatpush.msra.mxu0 %v128
    %1735 = vmatpush.msra.mxu0 %v124
    %1736 = vmatpush.msra.mxu0 %v120
    %1737 = vmatpush.msra.mxu0 %v116
    %1738 = vmatpush.msra.mxu0 %v112
    %1739 = vmatpush.msra.mxu0 %v108
    %1740 = vmatmul.f32.gmra.mxu0 %v1623
    %v1741 = vpop.f32.mrf.mxu0
    %v1742 = vadd.f32 %v1722, %v1741
    %1743 = vdwg.mxu0
    %1744 = vmatpush.msra.mxu0 %v105
    %1745 = vmatpush.msra.mxu0 %v101
    %1746 = vmatpush.msra.mxu0 %v97
    %1747 = vmatpush.msra.mxu0 %v93
    %1748 = vmatpush.msra.mxu0 %v89
    %1749 = vmatpush.msra.mxu0 %v85
    %1750 = vmatpush.msra.mxu0 %v81
    %1751 = vmatpush.msra.mxu0 %v77
    %1752 = vmatpush.msra.mxu0 %v73
    %1753 = vmatpush.msra.mxu0 %v69
    %1754 = vmatpush.msra.mxu0 %v65
    %1755 = vmatpush.msra.mxu0 %v61
    %1756 = vmatpush.msra.mxu0 %v57
    %1757 = vmatpush.msra.mxu0 %v53
    %1758 = vmatpush.msra.mxu0 %v49
    %1759 = vmatpush.msra.mxu0 %v45
    %1760 = vmatmul.f32.gmra.mxu0 %v1622
    %v1761 = vpop.f32.mrf.mxu0
    %v1762 = vadd.f32 %v180, %v1761
    %1763 = vdwg.mxu0
    %1764 = vmatpush.msra.mxu0 %v169
    %1765 = vmatpush.msra.mxu0 %v165
    %1766 = vmatpush.msra.mxu0 %v161
    %1767 = vmatpush.msra.mxu0 %v157
    %1768 = vmatpush.msra.mxu0 %v153
    %1769 = vmatpush.msra.mxu0 %v149
    %1770 = vmatpush.msra.mxu0 %v145
    %1771 = vmatpush.msra.mxu0 %v141
    %1772 = vmatpush.msra.mxu0 %v137
    %1773 = vmatpush.msra.mxu0 %v133
    %1774 = vmatpush.msra.mxu0 %v129
    %1775 = vmatpush.msra.mxu0 %v125
    %1776 = vmatpush.msra.mxu0 %v121
    %1777 = vmatpush.msra.mxu0 %v117
    %1778 = vmatpush.msra.mxu0 %v113
    %1779 = vmatpush.msra.mxu0 %v109
    %1780 = vmatmul.f32.gmra.mxu0 %v1623
    %v1781 = vpop.f32.mrf.mxu0
    %v1782 = vadd.f32 %v1762, %v1781
    %1783 = vdwg.mxu0
    %v1784 = vxor.u32 %v1662, 2147483648
    %v1785 = vmul.f32 %v1784, 1.442695
    %v1786 = vpow.pop %v1785
    %v1787 = vadd.f32 %v1786, 1.0
    %v1788 = vrcp.pop %v1787
    %v1789 = vmul.f32 %v1787, %v1788
    %v1790 = vsub.f32 1.0, %v1789
    %v1791 = vmul.f32 %v1788, %v1790
    %v1792 = vadd.f32 %v1788, %v1791
    %vm1793 = vweird.f32 %v1787
    %vm1794 = vweird.f32 %v1788
    %vm1795 = vmor %vm1793, %vm1794
    %v1796 = vsel %vm1795, %v1788, %v1792
    %v1797 = vand.u32 2147483647, %v1787
    %vm1798 = vcmp.eq.f32.partialorder %v1797, 8.507059e+37
    %v1799 = vand.u32 %v1787, 2147483648
    %v1800 = vor.u32 1.1754944e-38, %v1799
    %v1801 = vsel %vm1798, %v1800, %v1796
    %v1802 = vmul.f32 1.0, %v1801
    %v1803 = vxor.u32 %v1702, 2147483648
    %v1804 = vmul.f32 %v1803, 1.442695
    %v1805 = vpow.pop %v1804
    %v1806 = vadd.f32 %v1805, 1.0
    %v1807 = vrcp.pop %v1806
    %v1808 = vmul.f32 %v1806, %v1807
    %v1809 = vsub.f32 1.0, %v1808
    %v1810 = vmul.f32 %v1807, %v1809
    %v1811 = vadd.f32 %v1807, %v1810
    %vm1812 = vweird.f32 %v1806
    %vm1813 = vweird.f32 %v1807
    %vm1814 = vmor %vm1812, %vm1813
    %v1815 = vsel %vm1814, %v1807, %v1811
    %v1816 = vand.u32 2147483647, %v1806
    %vm1817 = vcmp.eq.f32.partialorder %v1816, 8.507059e+37
    %v1818 = vand.u32 %v1806, 2147483648
    %v1819 = vor.u32 1.1754944e-38, %v1818
    %v1820 = vsel %vm1817, %v1819, %v1815
    %v1821 = vmul.f32 1.0, %v1820
    %v1822 = vtanh.pop %v1742
    %v1823 = vxor.u32 %v1782, 2147483648
    %v1824 = vmul.f32 %v1823, 1.442695
    %v1825 = vpow.pop %v1824
    %v1826 = vadd.f32 %v1825, 1.0
    %v1827 = vrcp.pop %v1826
    %v1828 = vmul.f32 %v1826, %v1827
    %v1829 = vsub.f32 1.0, %v1828
    %v1830 = vmul.f32 %v1827, %v1829
    %v1831 = vadd.f32 %v1827, %v1830
    %vm1832 = vweird.f32 %v1826
    %vm1833 = vweird.f32 %v1827
    %vm1834 = vmor %vm1832, %vm1833
    %v1835 = vsel %vm1834, %v1827, %v1831
    %v1836 = vand.u32 2147483647, %v1826
    %vm1837 = vcmp.eq.f32.partialorder %v1836, 8.507059e+37
    %v1838 = vand.u32 %v1826, 2147483648
    %v1839 = vor.u32 1.1754944e-38, %v1838
    %v1840 = vsel %vm1837, %v1839, %v1835
    %v1841 = vmul.f32 1.0, %v1840
    %v1842 = vmul.f32 %v1821, %v1615
    %v1843 = vmul.f32 %v1802, %v1822
    %v1844 = vadd.f32 %v1842, %v1843
    %v1845 = vtanh.pop %v1844
    %v1846 = vmul.f32 %v1841, %v1845
    %v1847 = vld [vmem:[%s1] sm:$0xff]
    %vm1848 = vcmp.gt.s32.totalorder %v1847, 6
    %v1849 = vsel %vm1848, 1, 0
    %1850 = vset.pattern.permute.xlu0 0
    %1851 = vperm.xlu0 %1850, %v1849
    %v1852 = vpop.permute.xlu0 %1851
    %vm1853 = vcmp.eq.s32.totalorder %v1852, 1
    %v1854 = vsel %vm1853, %v1846, %v1614
    %v1855 = vsel %vm1853, %v1844, %v1615
    %v1856 = vsel %vm1853, %v1846, 0.0
    %v1857 = vadd.f32 %v1617, %v1856
    %s1858 = scalar_lea.vmem %s0, 56
    %v1859 = vld [vmem:[%s1858] sm:$0xff]
    %1860 = vst [vmem:[#allocation2] sm:$0xff] %v1859
    %1861 = vst [vmem:[#allocation2 + $0x8] sm:$0xff] %v1854
    %v1862 = vld [vmem:[#allocation2] sm:$0xff]
    %v1863 = vld [vmem:[#allocation2 + $0x8] sm:$0xff]
    %1864 = vmatpush.msra.mxu0 %v102
    %1865 = vmatpush.msra.mxu0 %v98
    %1866 = vmatpush.msra.mxu0 %v94
    %1867 = vmatpush.msra.mxu0 %v90
    %1868 = vmatpush.msra.mxu0 %v86
    %1869 = vmatpush.msra.mxu0 %v82
    %1870 = vmatpush.msra.mxu0 %v78
    %1871 = vmatpush.msra.mxu0 %v74
    %1872 = vmatpush.msra.mxu0 %v70
    %1873 = vmatpush.msra.mxu0 %v66
    %1874 = vmatpush.msra.mxu0 %v62
    %1875 = vmatpush.msra.mxu0 %v58
    %1876 = vmatpush.msra.mxu0 %v54
    %1877 = vmatpush.msra.mxu0 %v50
    %1878 = vmatpush.msra.mxu0 %v46
    %1879 = vmatpush.msra.mxu0 %v42
    %1880 = vmatmul.f32.gmra.mxu0 %v1862
    %v1881 = vpop.f32.mrf.mxu0
    %v1882 = vadd.f32 %v177, %v1881
    %1883 = vdwg.mxu0
    %1884 = vmatpush.msra.mxu0 %v166
    %1885 = vmatpush.msra.mxu0 %v162
    %1886 = vmatpush.msra.mxu0 %v158
    %1887 = vmatpush.msra.mxu0 %v154
    %1888 = vmatpush.msra.mxu0 %v150
    %1889 = vmatpush.msra.mxu0 %v146
    %1890 = vmatpush.msra.mxu0 %v142
    %1891 = vmatpush.msra.mxu0 %v138
    %1892 = vmatpush.msra.mxu0 %v134
    %1893 = vmatpush.msra.mxu0 %v130
    %1894 = vmatpush.msra.mxu0 %v126
    %1895 = vmatpush.msra.mxu0 %v122
    %1896 = vmatpush.msra.mxu0 %v118
    %1897 = vmatpush.msra.mxu0 %v114
    %1898 = vmatpush.msra.mxu0 %v110
    %1899 = vmatpush.msra.mxu0 %v106
    %1900 = vmatmul.f32.gmra.mxu0 %v1863
    %v1901 = vpop.f32.mrf.mxu0
    %v1902 = vadd.f32 %v1882, %v1901
    %1903 = vdwg.mxu0
    %1904 = vmatpush.msra.mxu0 %v103
    %1905 = vmatpush.msra.mxu0 %v99
    %1906 = vmatpush.msra.mxu0 %v95
    %1907 = vmatpush.msra.mxu0 %v91
    %1908 = vmatpush.msra.mxu0 %v87
    %1909 = vmatpush.msra.mxu0 %v83
    %1910 = vmatpush.msra.mxu0 %v79
    %1911 = vmatpush.msra.mxu0 %v75
    %1912 = vmatpush.msra.mxu0 %v71
    %1913 = vmatpush.msra.mxu0 %v67
    %1914 = vmatpush.msra.mxu0 %v63
    %1915 = vmatpush.msra.mxu0 %v59
    %1916 = vmatpush.msra.mxu0 %v55
    %1917 = vmatpush.msra.mxu0 %v51
    %1918 = vmatpush.msra.mxu0 %v47
    %1919 = vmatpush.msra.mxu0 %v43
    %1920 = vmatmul.f32.gmra.mxu0 %v1862
    %v1921 = vpop.f32.mrf.mxu0
    %v1922 = vadd.f32 %v178, %v1921
    %1923 = vdwg.mxu0
    %1924 = vmatpush.msra.mxu0 %v167
    %1925 = vmatpush.msra.mxu0 %v163
    %1926 = vmatpush.msra.mxu0 %v159
    %1927 = vmatpush.msra.mxu0 %v155
    %1928 = vmatpush.msra.mxu0 %v151
    %1929 = vmatpush.msra.mxu0 %v147
    %1930 = vmatpush.msra.mxu0 %v143
    %1931 = vmatpush.msra.mxu0 %v139
    %1932 = vmatpush.msra.mxu0 %v135
    %1933 = vmatpush.msra.mxu0 %v131
    %1934 = vmatpush.msra.mxu0 %v127
    %1935 = vmatpush.msra.mxu0 %v123
    %1936 = vmatpush.msra.mxu0 %v119
    %1937 = vmatpush.msra.mxu0 %v115
    %1938 = vmatpush.msra.mxu0 %v111
    %1939 = vmatpush.msra.mxu0 %v107
    %1940 = vmatmul.f32.gmra.mxu0 %v1863
    %v1941 = vpop.f32.mrf.mxu0
    %v1942 = vadd.f32 %v1922, %v1941
    %1943 = vdwg.mxu0
    %1944 = vmatpush.msra.mxu0 %v104
    %1945 = vmatpush.msra.mxu0 %v100
    %1946 = vmatpush.msra.mxu0 %v96
    %1947 = vmatpush.msra.mxu0 %v92
    %1948 = vmatpush.msra.mxu0 %v88
    %1949 = vmatpush.msra.mxu0 %v84
    %1950 = vmatpush.msra.mxu0 %v80
    %1951 = vmatpush.msra.mxu0 %v76
    %1952 = vmatpush.msra.mxu0 %v72
    %1953 = vmatpush.msra.mxu0 %v68
    %1954 = vmatpush.msra.mxu0 %v64
    %1955 = vmatpush.msra.mxu0 %v60
    %1956 = vmatpush.msra.mxu0 %v56
    %1957 = vmatpush.msra.mxu0 %v52
    %1958 = vmatpush.msra.mxu0 %v48
    %1959 = vmatpush.msra.mxu0 %v44
    %1960 = vmatmul.f32.gmra.mxu0 %v1862
    %v1961 = vpop.f32.mrf.mxu0
    %v1962 = vadd.f32 %v179, %v1961
    %1963 = vdwg.mxu0
    %1964 = vmatpush.msra.mxu0 %v168
    %1965 = vmatpush.msra.mxu0 %v164
    %1966 = vmatpush.msra.mxu0 %v160
    %1967 = vmatpush.msra.mxu0 %v156
    %1968 = vmatpush.msra.mxu0 %v152
    %1969 = vmatpush.msra.mxu0 %v148
    %1970 = vmatpush.msra.mxu0 %v144
    %1971 = vmatpush.msra.mxu0 %v140
    %1972 = vmatpush.msra.mxu0 %v136
    %1973 = vmatpush.msra.mxu0 %v132
    %1974 = vmatpush.msra.mxu0 %v128
    %1975 = vmatpush.msra.mxu0 %v124
    %1976 = vmatpush.msra.mxu0 %v120
    %1977 = vmatpush.msra.mxu0 %v116
    %1978 = vmatpush.msra.mxu0 %v112
    %1979 = vmatpush.msra.mxu0 %v108
    %1980 = vmatmul.f32.gmra.mxu0 %v1863
    %v1981 = vpop.f32.mrf.mxu0
    %v1982 = vadd.f32 %v1962, %v1981
    %1983 = vdwg.mxu0
    %1984 = vmatpush.msra.mxu0 %v105
    %1985 = vmatpush.msra.mxu0 %v101
    %1986 = vmatpush.msra.mxu0 %v97
    %1987 = vmatpush.msra.mxu0 %v93
    %1988 = vmatpush.msra.mxu0 %v89
    %1989 = vmatpush.msra.mxu0 %v85
    %1990 = vmatpush.msra.mxu0 %v81
    %1991 = vmatpush.msra.mxu0 %v77
    %1992 = vmatpush.msra.mxu0 %v73
    %1993 = vmatpush.msra.mxu0 %v69
    %1994 = vmatpush.msra.mxu0 %v65
    %1995 = vmatpush.msra.mxu0 %v61
    %1996 = vmatpush.msra.mxu0 %v57
    %1997 = vmatpush.msra.mxu0 %v53
    %1998 = vmatpush.msra.mxu0 %v49
    %1999 = vmatpush.msra.mxu0 %v45
    %2000 = vmatmul.f32.gmra.mxu0 %v1862
    %v2001 = vpop.f32.mrf.mxu0
    %v2002 = vadd.f32 %v180, %v2001
    %2003 = vdwg.mxu0
    %2004 = vmatpush.msra.mxu0 %v169
    %2005 = vmatpush.msra.mxu0 %v165
    %2006 = vmatpush.msra.mxu0 %v161
    %2007 = vmatpush.msra.mxu0 %v157
    %2008 = vmatpush.msra.mxu0 %v153
    %2009 = vmatpush.msra.mxu0 %v149
    %2010 = vmatpush.msra.mxu0 %v145
    %2011 = vmatpush.msra.mxu0 %v141
    %2012 = vmatpush.msra.mxu0 %v137
    %2013 = vmatpush.msra.mxu0 %v133
    %2014 = vmatpush.msra.mxu0 %v129
    %2015 = vmatpush.msra.mxu0 %v125
    %2016 = vmatpush.msra.mxu0 %v121
    %2017 = vmatpush.msra.mxu0 %v117
    %2018 = vmatpush.msra.mxu0 %v113
    %2019 = vmatpush.msra.mxu0 %v109
    %2020 = vmatmul.f32.gmra.mxu0 %v1863
    %v2021 = vpop.f32.mrf.mxu0
    %v2022 = vadd.f32 %v2002, %v2021
    %2023 = vdwg.mxu0
    %v2024 = vxor.u32 %v1902, 2147483648
    %v2025 = vmul.f32 %v2024, 1.442695
    %v2026 = vpow.pop %v2025
    %v2027 = vadd.f32 %v2026, 1.0
    %v2028 = vrcp.pop %v2027
    %v2029 = vmul.f32 %v2027, %v2028
    %v2030 = vsub.f32 1.0, %v2029
    %v2031 = vmul.f32 %v2028, %v2030
    %v2032 = vadd.f32 %v2028, %v2031
    %vm2033 = vweird.f32 %v2027
    %vm2034 = vweird.f32 %v2028
    %vm2035 = vmor %vm2033, %vm2034
    %v2036 = vsel %vm2035, %v2028, %v2032
    %v2037 = vand.u32 2147483647, %v2027
    %vm2038 = vcmp.eq.f32.partialorder %v2037, 8.507059e+37
    %v2039 = vand.u32 %v2027, 2147483648
    %v2040 = vor.u32 1.1754944e-38, %v2039
    %v2041 = vsel %vm2038, %v2040, %v2036
    %v2042 = vmul.f32 1.0, %v2041
    %v2043 = vxor.u32 %v1942, 2147483648
    %v2044 = vmul.f32 %v2043, 1.442695
    %v2045 = vpow.pop %v2044
    %v2046 = vadd.f32 %v2045, 1.0
    %v2047 = vrcp.pop %v2046
    %v2048 = vmul.f32 %v2046, %v2047
    %v2049 = vsub.f32 1.0, %v2048
    %v2050 = vmul.f32 %v2047, %v2049
    %v2051 = vadd.f32 %v2047, %v2050
    %vm2052 = vweird.f32 %v2046
    %vm2053 = vweird.f32 %v2047
    %vm2054 = vmor %vm2052, %vm2053
    %v2055 = vsel %vm2054, %v2047, %v2051
    %v2056 = vand.u32 2147483647, %v2046
    %vm2057 = vcmp.eq.f32.partialorder %v2056, 8.507059e+37
    %v2058 = vand.u32 %v2046, 2147483648
    %v2059 = vor.u32 1.1754944e-38, %v2058
    %v2060 = vsel %vm2057, %v2059, %v2055
    %v2061 = vmul.f32 1.0, %v2060
    %v2062 = vtanh.pop %v1982
    %v2063 = vxor.u32 %v2022, 2147483648
    %v2064 = vmul.f32 %v2063, 1.442695
    %v2065 = vpow.pop %v2064
    %v2066 = vadd.f32 %v2065, 1.0
    %v2067 = vrcp.pop %v2066
    %v2068 = vmul.f32 %v2066, %v2067
    %v2069 = vsub.f32 1.0, %v2068
    %v2070 = vmul.f32 %v2067, %v2069
    %v2071 = vadd.f32 %v2067, %v2070
    %vm2072 = vweird.f32 %v2066
    %vm2073 = vweird.f32 %v2067
    %vm2074 = vmor %vm2072, %vm2073
    %v2075 = vsel %vm2074, %v2067, %v2071
    %v2076 = vand.u32 2147483647, %v2066
    %vm2077 = vcmp.eq.f32.partialorder %v2076, 8.507059e+37
    %v2078 = vand.u32 %v2066, 2147483648
    %v2079 = vor.u32 1.1754944e-38, %v2078
    %v2080 = vsel %vm2077, %v2079, %v2075
    %v2081 = vmul.f32 1.0, %v2080
    %v2082 = vmul.f32 %v2061, %v1855
    %v2083 = vmul.f32 %v2042, %v2062
    %v2084 = vadd.f32 %v2082, %v2083
    %v2085 = vtanh.pop %v2084
    %v2086 = vmul.f32 %v2081, %v2085
    %v2087 = vld [vmem:[%s1] sm:$0xff]
    %vm2088 = vcmp.gt.s32.totalorder %v2087, 7
    %v2089 = vsel %vm2088, 1, 0
    %2090 = vset.pattern.permute.xlu0 0
    %2091 = vperm.xlu0 %2090, %v2089
    %v2092 = vpop.permute.xlu0 %2091
    %vm2093 = vcmp.eq.s32.totalorder %v2092, 1
    %v2094 = vsel %vm2093, %v2086, 0.0
    %v2095 = vadd.f32 %v1857, %v2094
    %v2096 = vld [vmem:[%s2] sm:$0xff]
    %2098 = vset.pattern.permute.xlu0 0
    %2099 = vperm.xlu0 %2098, %v2096
    %v2100 = vpop.permute.xlu0 %2099
    %v2102 = vmul.f32 %v2095, %v2100
    %v2103 = vld [vmem:[%s5] sm:$0xff]
    %v2104 = vld [vmem:[%s5 + $0x8] sm:$0xff]
    %v2105 = vld [vmem:[%s5 + $0x10] sm:$0xff]
    %v2106 = vld [vmem:[%s5 + $0x18] sm:$0xff]
    %v2107 = vld [vmem:[%s5 + $0x20] sm:$0xff]
    %v2108 = vld [vmem:[%s5 + $0x28] sm:$0xff]
    %v2109 = vld [vmem:[%s5 + $0x30] sm:$0xff]
    %v2110 = vld [vmem:[%s5 + $0x38] sm:$0xff]
    %v2111 = vld [vmem:[%s5 + $0x40] sm:$0xff]
    %v2112 = vld [vmem:[%s5 + $0x48] sm:$0xff]
    %v2113 = vld [vmem:[%s5 + $0x50] sm:$0xff]
    %v2114 = vld [vmem:[%s5 + $0x58] sm:$0xff]
    %v2115 = vld [vmem:[%s5 + $0x60] sm:$0xff]
    %v2116 = vld [vmem:[%s5 + $0x68] sm:$0xff]
    %v2117 = vld [vmem:[%s5 + $0x70] sm:$0xff]
    %v2118 = vld [vmem:[%s5 + $0x78] sm:$0xff]
    %v2119 = vld [vmem:[%s6] sm:$0x1]
    %v2121 = vperm.slane %v2119, 0
    %2123 = vmatpush.msra.mxu0 %v2118
    %2124 = vmatpush.msra.mxu0 %v2117
    %2125 = vmatpush.msra.mxu0 %v2116
    %2126 = vmatpush.msra.mxu0 %v2115
    %2127 = vmatpush.msra.mxu0 %v2114
    %2128 = vmatpush.msra.mxu0 %v2113
    %2129 = vmatpush.msra.mxu0 %v2112
    %2130 = vmatpush.msra.mxu0 %v2111
    %2131 = vmatpush.msra.mxu0 %v2110
    %2132 = vmatpush.msra.mxu0 %v2109
    %2133 = vmatpush.msra.mxu0 %v2108
    %2134 = vmatpush.msra.mxu0 %v2107
    %2135 = vmatpush.msra.mxu0 %v2106
    %2136 = vmatpush.msra.mxu0 %v2105
    %2137 = vmatpush.msra.mxu0 %v2104
    %2138 = vmatpush.msra.mxu0 %v2103
    %2139 = vmatmul.f32.gmra.mxu0 %v2102
    %v2140 = vpop.f32.mrf.mxu0
    %v2141 = vadd.f32 %v2121, %v2140
    %2142 = vdwg.mxu0
    %vm2143 = vcmask 31744
    %2144 = vst.msk [vmem:[%s7] sm:$0xff] %vm2143, %v2141
    // Predicated region
    $region34: #{tpu_custom_call.1} parent=1 // pred_check
      _
    $region35: #{tpu_custom_call.1} parent=1 // pred_check_branch
      %2146 = sbr.rel (0) target = $region37
    $region36: #{tpu_custom_call.1} parent=1 // pred_region
      _
    $region37: #{tpu_custom_call.1} parent=1 // pred_fallthru
      _
    // Predicated region
    $region38: #{tpu_custom_call.1} parent=1 // pred_check
      _
    $region39: #{tpu_custom_call.1} parent=1 // pred_check_branch
      %2148 = sbr.rel (0) target = $region41
    $region40: #{tpu_custom_call.1} parent=1 // pred_region
      _
    $region41: #{tpu_custom_call.1} parent=1 // pred_fallthru
      _
    %2149 = vsyncpa [#allocation4], 1

</llo_original>
